<compile_context>
chip_gen: v7x
topology: tpu7x:2x2x1
jax: 0.10.0
libtpu: 0.0.40
codegen_flags: <defaults>
</compile_context>

<pallas_src>
import functools

import jax
import jax.numpy as jnp
from jax import lax
from jax.experimental import pallas as pl
from jax.experimental.pallas import tpu as pltpu


def _sigmoid(z):
    # sigmoid(z) == 0.5 * (tanh(z/2) + 1): EUP-only, no divide / Newton on the
    # per-timestep critical path.  Mathematically identical to 1/(1+exp(-z)).
    return 0.5 * (jnp.tanh(0.5 * z) + 1.0)


def _pick_time_chunk(T, B, max_chunk):
    """Largest Tc <= max_chunk with T % Tc == 0 and (Tc*B) % 8 == 0, else T."""
    for tc in range(min(T, max_chunk), 0, -1):
        if T % tc == 0 and (tc * B) % 8 == 0:
            return tc
    return T


# ----------------------------------------------------------------------------
# Kernel 1: one LSTM layer (chunked recurrence) + LayerNorm (+ residual)
# ----------------------------------------------------------------------------
def _lstm_layer_kernel(H, B, Tc, add_residual, unroll,
                       x_ref, w_ih_ref, w_hh_ref, b_ref, gamma_ref, beta_ref,
                       y_ref, h_ref, c_ref, gx_ref):
    c_idx = pl.program_id(0)

    @pl.when(c_idx == 0)
    def _():
        # h0 = c0 = zeros, re-initialised for every layer (matches PyTorch).
        h_ref[...] = jnp.zeros_like(h_ref)
        c_ref[...] = jnp.zeros_like(c_ref)

    # ---- hoisted input projection: one (Tc*B, D_in) @ (D_in, 4H) matmul ----
    gx_ref[...] = (
        jnp.dot(x_ref[...], w_ih_ref[...], preferred_element_type=jnp.float32)
        + b_ref[...]
    )

    w_hh = w_hh_ref[...]
    gamma = gamma_ref[...]
    beta = beta_ref[...]

    def step(t, carry):
        h_prev, c_prev = carry
        rows = pl.ds(t * B, B)                 # timestep t's rows in the chunk
        gates = gx_ref[rows, :] + jnp.dot(
            h_prev.astype(w_hh.dtype), w_hh, preferred_element_type=jnp.float32)
        # PyTorch gate order: i, f, g, o
        i_g = _sigmoid(gates[:, 0 * H:1 * H])
        f_g = _sigmoid(gates[:, 1 * H:2 * H])
        g_g = jnp.tanh(gates[:, 2 * H:3 * H])
        o_g = _sigmoid(gates[:, 3 * H:4 * H])
        c_new = f_g * c_prev + i_g * g_g
        h_new = o_g * jnp.tanh(c_new)
        # LayerNorm over hidden dim (eps=1e-5, biased variance, as nn.LayerNorm)
        mu = jnp.mean(h_new, axis=-1, keepdims=True)
        var = jnp.mean(jnp.square(h_new - mu), axis=-1, keepdims=True)
        y = (h_new - mu) * lax.rsqrt(var + 1e-5) * gamma + beta
        if add_residual:
            # residual (i>0) == this layer's own input -> reuse resident block.
            y = y + x_ref[rows, :].astype(jnp.float32)
        y_ref[rows, :] = y.astype(y_ref.dtype)
        return h_new, c_new

    h_fin, c_fin = lax.fori_loop(0, Tc, step, (h_ref[...], c_ref[...]),
                                 unroll=unroll)
    h_ref[...] = h_fin
    c_ref[...] = c_fin


def lstm_layer(x_flat, w_ih, w_hh, b, gamma, beta, *, seq_len, batch,
               add_residual, chunk_t=8):
    """One LSTM layer + LayerNorm (+ residual).

    x_flat: (T*B, D_in) time-major-flattened activations.
    w_ih:   (D_in, 4H)  (transposed PyTorch weight_ih)
    w_hh:   (H, 4H)     (transposed PyTorch weight_hh)
    b:      (1, 4H)     b_ih + b_hh        gamma/beta: (1, H)
    returns (T*B, H) in x_flat.dtype.
    """
    T, B = seq_len, batch
    TB, D_in = x_flat.shape
    assert TB == T * B
    H = w_hh.shape[0]
    if add_residual:
        assert D_in == H
    Tc = _pick_time_chunk(T, B, chunk_t)
    n_chunks = T // Tc
    unroll = True if Tc <= 16 else 8

    kernel = functools.partial(_lstm_layer_kernel, H, B, Tc, add_residual, unroll)

    return pl.pallas_call(
        kernel,
        out_shape=jax.ShapeDtypeStruct((T * B, H), x_flat.dtype),
        grid_spec=pltpu.PrefetchScalarGridSpec(
            num_scalar_prefetch=0,
            grid=(n_chunks,),
            in_specs=[
                pl.BlockSpec((Tc * B, D_in), lambda c: (c, 0)),   # streamed x chunk
                pl.BlockSpec((D_in, 4 * H), lambda c: (0, 0)),    # resident weights
                pl.BlockSpec((H, 4 * H), lambda c: (0, 0)),
                pl.BlockSpec((1, 4 * H), lambda c: (0, 0)),
                pl.BlockSpec((1, H), lambda c: (0, 0)),
                pl.BlockSpec((1, H), lambda c: (0, 0)),
            ],
            out_specs=pl.BlockSpec((Tc * B, H), lambda c: (c, 0)),
            scratch_shapes=[
                pltpu.VMEM((B, H), jnp.float32),            # h carry
                pltpu.VMEM((B, H), jnp.float32),            # c carry
                pltpu.VMEM((Tc * B, 4 * H), jnp.float32),   # chunk's x @ W_ih
            ],
        ),
        compiler_params=pltpu.CompilerParams(
            # Time recurrence -> the grid must run sequentially.
            dimension_semantics=("arbitrary",),
        ),
    )(x_flat, w_ih, w_hh, b, gamma, beta)


# ----------------------------------------------------------------------------
# Kernel 2: last LSTM layer + LayerNorm (+ residual) + fused classifier head
# ----------------------------------------------------------------------------
def _lstm_last_head_kernel(H, B, Tc, add_residual, unroll,
                           x_ref, w_ih_ref, w_hh_ref, b_ref, gamma_ref, beta_ref,
                           w1_ref, b1_ref, w2_ref, b2_ref,
                           o_ref, h_ref, c_ref, gx_ref, h1_ref):
    c_idx = pl.program_id(0)

    @pl.when(c_idx == 0)
    def _():
        h_ref[...] = jnp.zeros_like(h_ref)
        c_ref[...] = jnp.zeros_like(c_ref)
        h1_ref[...] = jnp.zeros_like(h1_ref)    # fused feat @ W1 accumulator

    gx_ref[...] = (
        jnp.dot(x_ref[...], w_ih_ref[...], preferred_element_type=jnp.float32)
        + b_ref[...]
    )

    w_hh = w_hh_ref[...]
    gamma = gamma_ref[...]
    beta = beta_ref[...]

    def step(t, carry):
        h_prev, c_prev = carry
        rows = pl.ds(t * B, B)
        gates = gx_ref[rows, :] + jnp.dot(
            h_prev.astype(w_hh.dtype), w_hh, preferred_element_type=jnp.float32)
        i_g = _sigmoid(gates[:, 0 * H:1 * H])
        f_g = _sigmoid(gates[:, 1 * H:2 * H])
        g_g = jnp.tanh(gates[:, 2 * H:3 * H])
        o_g = _sigmoid(gates[:, 3 * H:4 * H])
        c_new = f_g * c_prev + i_g * g_g
        h_new = o_g * jnp.tanh(c_new)
        mu = jnp.mean(h_new, axis=-1, keepdims=True)
        var = jnp.mean(jnp.square(h_new - mu), axis=-1, keepdims=True)
        y = (h_new - mu) * lax.rsqrt(var + 1e-5) * gamma + beta
        if add_residual:
            y = y + x_ref[rows, :].astype(jnp.float32)
        # Fused head, part 1: feat[:, t_global] = mean_H(y); h1 += feat ⊗ W1 row.
        feat_t = jnp.mean(y, axis=-1, keepdims=True)            # (B, 1)
        w1_row = w1_ref[pl.ds(c_idx * Tc + t, 1), :]             # (1, 512)
        h1_ref[...] += feat_t * w1_row.astype(jnp.float32)
        return h_new, c_new

    h_fin, c_fin = lax.fori_loop(0, Tc, step, (h_ref[...], c_ref[...]),
                                 unroll=unroll)
    h_ref[...] = h_fin
    c_ref[...] = c_fin

    # Fused head, part 2 (last chunk only): +b1 -> Linear(512, O) -> output.
    @pl.when(c_idx == pl.num_programs(0) - 1)
    def _():
        h1 = h1_ref[...] + b1_ref[...]
        out = jnp.dot(h1.astype(w2_ref.dtype), w2_ref[...],
                      preferred_element_type=jnp.float32) + b2_ref[...]
        o_ref[...] = out.astype(o_ref.dtype)


def lstm_last_layer_and_head(x_flat, w_ih, w_hh, b, gamma, beta,
                             w1, b1, w2, b2, *, seq_len, batch,
                             add_residual, chunk_t=8, out_dtype=jnp.float32):
    """Last LSTM layer fused with: mean over H -> Linear(T,512) -> Linear(512,O)."""
    T, B = seq_len, batch
    TB, D_in = x_flat.shape
    assert TB == T * B
    H = w_hh.shape[0]
    F1 = w1.shape[1]
    O = w2.shape[1]
    if add_residual:
        assert D_in == H
    Tc = _pick_time_chunk(T, B, chunk_t)
    n_chunks = T // Tc
    unroll = True if Tc <= 16 else 8

    kernel = functools.partial(
        _lstm_last_head_kernel, H, B, Tc, add_residual, unroll)

    return pl.pallas_call(
        kernel,
        out_shape=jax.ShapeDtypeStruct((B, O), out_dtype),
        grid_spec=pltpu.PrefetchScalarGridSpec(
            num_scalar_prefetch=0,
            grid=(n_chunks,),
            in_specs=[
                pl.BlockSpec((Tc * B, D_in), lambda c: (c, 0)),   # streamed x chunk
                pl.BlockSpec((D_in, 4 * H), lambda c: (0, 0)),    # resident weights
                pl.BlockSpec((H, 4 * H), lambda c: (0, 0)),
                pl.BlockSpec((1, 4 * H), lambda c: (0, 0)),
                pl.BlockSpec((1, H), lambda c: (0, 0)),
                pl.BlockSpec((1, H), lambda c: (0, 0)),
                pl.BlockSpec((T, F1), lambda c: (0, 0)),          # head weights
                pl.BlockSpec((1, F1), lambda c: (0, 0)),
                pl.BlockSpec((F1, O), lambda c: (0, 0)),
                pl.BlockSpec((1, O), lambda c: (0, 0)),
            ],
            out_specs=pl.BlockSpec((B, O), lambda c: (0, 0)),
            scratch_shapes=[
                pltpu.VMEM((B, H), jnp.float32),            # h carry
                pltpu.VMEM((B, H), jnp.float32),            # c carry
                pltpu.VMEM((Tc * B, 4 * H), jnp.float32),   # chunk's x @ W_ih
                pltpu.VMEM((B, F1), jnp.float32),           # feat @ W1 accumulator
            ],
        ),
        compiler_params=pltpu.CompilerParams(
            dimension_semantics=("arbitrary",),
        ),
    )(x_flat, w_ih, w_hh, b, gamma, beta, w1, b1, w2, b2)


# ----------------------------------------------------------------------------
# Full forward (wrapper glue: one input transpose + flatten only)
# ----------------------------------------------------------------------------
def personal_lstm_classifier_forward(x, params, *, matmul_dtype=jnp.float32,
                                     chunk_t=8):
    """x: (B, T, input_dim), batch_first, eval-mode semantics."""
    B, T, D_in = x.shape
    layers = params["layers"]
    n_layers = len(layers)

    # Time-major, flattened to (T*B, D).  The flatten is free in XLA; only the
    # (B,T,D)->(T,B,D) transpose of the (small) network input touches HBM.
    cur = jnp.transpose(x, (1, 0, 2)).reshape(T * B, D_in).astype(matmul_dtype)

    for li in range(n_layers - 1):
        lyr = layers[li]
        cur = lstm_layer(
            cur,
            lyr["w_ih"].astype(matmul_dtype), lyr["w_hh"].astype(matmul_dtype),
            lyr["b"], lyr["gamma"], lyr["beta"],
            seq_len=T, batch=B, add_residual=(li != 0), chunk_t=chunk_t)

    last = layers[-1]
    return lstm_last_layer_and_head(
        cur,
        last["w_ih"].astype(matmul_dtype), last["w_hh"].astype(matmul_dtype),
        last["b"], last["gamma"], last["beta"],
        params["w1"], params["b1"], params["w2"], params["b2"],
        seq_len=T, batch=B, add_residual=(n_layers > 1), chunk_t=chunk_t)


# ----------------------------------------------------------------------------
# Pure-JAX reference (same math, no Pallas) for correctness checking
# ----------------------------------------------------------------------------
def ref_forward(x, params):
    HIGH = lax.Precision.HIGHEST
    B, T, _ = x.shape
    cur = x
    residual = None
    for li, layer in enumerate(params["layers"]):
        H = layer["w_hh"].shape[0]
        h = jnp.zeros((B, H), jnp.float32)
        c = jnp.zeros((B, H), jnp.float32)
        outs = []
        for t in range(T):
            gates = (jnp.dot(cur[:, t, :], layer["w_ih"], precision=HIGH)
                     + jnp.dot(h, layer["w_hh"], precision=HIGH)
                     + layer["b"][0])
            i_g = _sigmoid(gates[:, 0 * H:1 * H])
            f_g = _sigmoid(gates[:, 1 * H:2 * H])
            g_g = jnp.tanh(gates[:, 2 * H:3 * H])
            o_g = _sigmoid(gates[:, 3 * H:4 * H])
            c = f_g * c + i_g * g_g
            h = o_g * jnp.tanh(c)
            outs.append(h)
        out = jnp.stack(outs, axis=1)                      # (B, T, H)
        mu = jnp.mean(out, axis=-1, keepdims=True)
        var = jnp.mean(jnp.square(out - mu), axis=-1, keepdims=True)
        y = (out - mu) * lax.rsqrt(var + 1e-5) * layer["gamma"][0] + layer["beta"][0]
        if li != 0:
            y = y + residual
        residual = y
        cur = y
    feat = jnp.mean(cur, axis=2)                           # (B, T)
    h1 = jnp.dot(feat, params["w1"], precision=HIGH) + params["b1"][0]
    return jnp.dot(h1, params["w2"], precision=HIGH) + params["b2"][0]


if __name__ == "__main__":
    # Small shapes consistent with the module.
    input_dim, hidden_dim, num_layers = 16, 32, 2
    output_dim, seq_length, batch = 4, 8, 2

    key = jax.random.PRNGKey(0)
    keys = jax.random.split(key, 16)

    x = jax.random.normal(keys[0], (batch, seq_length, input_dim), dtype=jnp.float32)

    # LSTM weights ~ U(-0.08, 0.08) as in init_params.  Biases / LayerNorm
    # params get small random values (instead of exact zeros/ones) so the
    # correctness check is numerically meaningful; the math is identical.
    layers = []
    for li in range(num_layers):
        d_in = input_dim if li == 0 else hidden_dim
        k_ih, k_hh, k_b, k_g, k_be = jax.random.split(keys[1 + li], 5)
        layers.append(dict(
            w_ih=jax.random.uniform(k_ih, (d_in, 4 * hidden_dim), jnp.float32, -0.08, 0.08),
            w_hh=jax.random.uniform(k_hh, (hidden_dim, 4 * hidden_dim), jnp.float32, -0.08, 0.08),
            b=0.1 * jax.random.normal(k_b, (1, 4 * hidden_dim), jnp.float32),
            gamma=1.0 + 0.1 * jax.random.normal(k_g, (1, hidden_dim), jnp.float32),
            beta=0.1 * jax.random.normal(k_be, (1, hidden_dim), jnp.float32),
        ))

    params = dict(
        layers=layers,
        w1=0.01 * jax.random.normal(keys[10], (seq_length, 512), jnp.float32),
        b1=0.01 * jax.random.normal(keys[11], (1, 512), jnp.float32),
        w2=0.01 * jax.random.normal(keys[12], (512, output_dim), jnp.float32),
        b2=0.01 * jax.random.normal(keys[13], (1, output_dim), jnp.float32),
    )

    # f32 run with 2 time chunks per layer (exercises chunked recurrence carry).
    out = personal_lstm_classifier_forward(x, params, chunk_t=4)
    out = jax.block_until_ready(out)
    assert out.shape == (batch, output_dim), out.shape

    ref = jax.block_until_ready(ref_forward(x, params))
    max_err = float(jnp.max(jnp.abs(out - ref)))
    assert jnp.allclose(out, ref, atol=1e-4, rtol=1e-3), (
        f"mismatch vs reference (max abs err {max_err})")

    # bf16-at-the-matmul-boundary run (v6e/v7x fast path; elementwise stays f32).
    out_bf16 = personal_lstm_classifier_forward(
        x, params, matmul_dtype=jnp.bfloat16, chunk_t=8)
    out_bf16 = jax.block_until_ready(out_bf16)
    assert out_bf16.shape == (batch, output_dim)
    assert bool(jnp.all(jnp.isfinite(out_bf16)))
    assert jnp.allclose(out_bf16, out, atol=2e-2), "bf16 path diverged from f32"

    print("KERNEL_OK")
</pallas_src>

<mosaic_0001>
module attributes {stable_mosaic.version = 11 : i64} {
  func.func @_lstm_layer_kernel(%arg0: i32, %arg1: memref<8x16xf32, #tpu.memory_space<vmem>>, %arg2: memref<16x128xf32, #tpu.memory_space<vmem>>, %arg3: memref<32x128xf32, #tpu.memory_space<vmem>>, %arg4: memref<1x128xf32, #tpu.memory_space<vmem>>, %arg5: memref<1x32xf32, #tpu.memory_space<vmem>>, %arg6: memref<1x32xf32, #tpu.memory_space<vmem>>, %arg7: memref<8x32xf32, #tpu.memory_space<vmem>>, %arg8: memref<2x32xf32, #tpu.memory_space<vmem>>, %arg9: memref<2x32xf32, #tpu.memory_space<vmem>>, %arg10: memref<8x128xf32, #tpu.memory_space<vmem>>) attributes {dimension_semantics = [#tpu.dimension_semantics<arbitrary>], iteration_bounds = array<i64: 2>, scalar_prefetch = 0 : i64, scratch_operands = 3 : i64, tpu.core_type = #tpu.core_type<tc>, window_params = [{transform_indices = @transform_0, window_bounds = array<i64: 8, 16>}, {pipeline_mode = #tpu.pipeline_mode<synchronous>, transform_indices = @transform_1, window_bounds = array<i64: 16, 128>}, {pipeline_mode = #tpu.pipeline_mode<synchronous>, transform_indices = @transform_2, window_bounds = array<i64: 32, 128>}, {pipeline_mode = #tpu.pipeline_mode<synchronous>, transform_indices = @transform_3, window_bounds = array<i64: 1, 128>}, {pipeline_mode = #tpu.pipeline_mode<synchronous>, transform_indices = @transform_4, window_bounds = array<i64: 1, 32>}, {pipeline_mode = #tpu.pipeline_mode<synchronous>, transform_indices = @transform_5, window_bounds = array<i64: 1, 32>}, {transform_indices = @transform_6, window_bounds = array<i64: 8, 32>}]} {
    %c0_i32 = arith.constant 0 : i32
    %0 = arith.cmpi eq, %arg0, %c0_i32 : i32
    %1 = arith.extui %0 : i1 to i32
    %c0_i32_0 = arith.constant 0 : i32
    %2 = arith.cmpi ne, %1, %c0_i32_0 : i32
    scf.if %2 {
      %cst_95 = arith.constant 0.000000e+00 : f32
      %257 = vector.broadcast %cst_95 : f32 to vector<2x32xf32>
      %c0_96 = arith.constant 0 : index
      %c0_97 = arith.constant 0 : index
      %258 = vector.load %arg8[%c0_96, %c0_97] : memref<2x32xf32, #tpu.memory_space<vmem>>, vector<2x32xf32>
      tpu.vector_store %arg8[%c0_96, %c0_97], %257 {strides = array<i32>} : memref<2x32xf32, #tpu.memory_space<vmem>>, vector<2x32xf32>,
      %cst_98 = arith.constant 0.000000e+00 : f32
      %259 = vector.broadcast %cst_98 : f32 to vector<2x32xf32>
      %c0_99 = arith.constant 0 : index
      %c0_100 = arith.constant 0 : index
      %260 = vector.load %arg9[%c0_99, %c0_100] : memref<2x32xf32, #tpu.memory_space<vmem>>, vector<2x32xf32>
      tpu.vector_store %arg9[%c0_99, %c0_100], %259 {strides = array<i32>} : memref<2x32xf32, #tpu.memory_space<vmem>>, vector<2x32xf32>,
    } else {
    }
    %c0 = arith.constant 0 : index
    %c0_1 = arith.constant 0 : index
    %3 = vector.load %arg1[%c0, %c0_1] : memref<8x16xf32, #tpu.memory_space<vmem>>, vector<8x16xf32>
    %c0_2 = arith.constant 0 : index
    %c0_3 = arith.constant 0 : index
    %4 = vector.load %arg2[%c0_2, %c0_3] : memref<16x128xf32, #tpu.memory_space<vmem>>, vector<16x128xf32>
    %cst = arith.constant dense<0.000000e+00> : vector<8x128xf32>
    %5 = tpu.matmul %3, %4, %cst {dimension_numbers = #tpu.dot_dimension_numbers<[1], [0], [0], [1], [0, 0, 1, 1], [], []>} : vector<8x16xf32>, vector<16x128xf32>, vector<8x128xf32> -> vector<8x128xf32>
    %c0_4 = arith.constant 0 : index
    %c0_5 = arith.constant 0 : index
    %6 = vector.load %arg4[%c0_4, %c0_5] : memref<1x128xf32, #tpu.memory_space<vmem>>, vector<1x128xf32>
    %7 = vector.broadcast %6 : vector<1x128xf32> to vector<8x128xf32>
    %8 = arith.addf %5, %7 : vector<8x128xf32>
    %c0_6 = arith.constant 0 : index
    %c0_7 = arith.constant 0 : index
    %9 = vector.load %arg10[%c0_6, %c0_7] : memref<8x128xf32, #tpu.memory_space<vmem>>, vector<8x128xf32>
    tpu.vector_store %arg10[%c0_6, %c0_7], %8 {strides = array<i32>} : memref<8x128xf32, #tpu.memory_space<vmem>>, vector<8x128xf32>,
    %c0_8 = arith.constant 0 : index
    %c0_9 = arith.constant 0 : index
    %10 = vector.load %arg3[%c0_8, %c0_9] : memref<32x128xf32, #tpu.memory_space<vmem>>, vector<32x128xf32>
    %c0_10 = arith.constant 0 : index
    %c0_11 = arith.constant 0 : index
    %11 = vector.load %arg5[%c0_10, %c0_11] : memref<1x32xf32, #tpu.memory_space<vmem>>, vector<1x32xf32>
    %c0_12 = arith.constant 0 : index
    %c0_13 = arith.constant 0 : index
    %12 = vector.load %arg6[%c0_12, %c0_13] : memref<1x32xf32, #tpu.memory_space<vmem>>, vector<1x32xf32>
    %c0_14 = arith.constant 0 : index
    %c0_15 = arith.constant 0 : index
    %13 = vector.load %arg8[%c0_14, %c0_15] : memref<2x32xf32, #tpu.memory_space<vmem>>, vector<2x32xf32>
    %c0_16 = arith.constant 0 : index
    %c0_17 = arith.constant 0 : index
    %14 = vector.load %arg9[%c0_16, %c0_17] : memref<2x32xf32, #tpu.memory_space<vmem>>, vector<2x32xf32>
    %c0_i32_18 = arith.constant 0 : i32
    %c2_i32 = arith.constant 2 : i32
    %15 = arith.muli %c0_i32_18, %c2_i32 : i32
    %16 = arith.index_cast %15 : i32 to index
    %c0_19 = arith.constant 0 : index
    %17 = vector.load %arg10[%16, %c0_19] : memref<8x128xf32, #tpu.memory_space<vmem>>, vector<2x128xf32>
    %cst_20 = arith.constant dense<0.000000e+00> : vector<2x128xf32>
    %18 = tpu.matmul %13, %10, %cst_20 {dimension_numbers = #tpu.dot_dimension_numbers<[1], [0], [0], [1], [0, 0, 1, 1], [], []>} : vector<2x32xf32>, vector<32x128xf32>, vector<2x128xf32> -> vector<2x128xf32>
    %19 = arith.addf %17, %18 : vector<2x128xf32>
    %20 = vector.extract_strided_slice %19 {offsets = [0, 0], sizes = [2, 32], strides = [1, 1]} : vector<2x128xf32> to vector<2x32xf32>
    %cst_21 = arith.constant 5.000000e-01 : f32
    %21 = vector.broadcast %cst_21 : f32 to vector<2x32xf32>
    %22 = arith.mulf %21, %20 : vector<2x32xf32>
    %23 = math.tanh %22 : vector<2x32xf32>
    %cst_22 = arith.constant 1.000000e+00 : f32
    %24 = vector.broadcast %cst_22 : f32 to vector<2x32xf32>
    %25 = arith.addf %23, %24 : vector<2x32xf32>
    %cst_23 = arith.constant 5.000000e-01 : f32
    %26 = vector.broadcast %cst_23 : f32 to vector<2x32xf32>
    %27 = arith.mulf %26, %25 : vector<2x32xf32>
    %28 = vector.extract_strided_slice %19 {offsets = [0, 32], sizes = [2, 32], strides = [1, 1]} : vector<2x128xf32> to vector<2x32xf32>
    %cst_24 = arith.constant 5.000000e-01 : f32
    %29 = vector.broadcast %cst_24 : f32 to vector<2x32xf32>
    %30 = arith.mulf %29, %28 : vector<2x32xf32>
    %31 = math.tanh %30 : vector<2x32xf32>
    %cst_25 = arith.constant 1.000000e+00 : f32
    %32 = vector.broadcast %cst_25 : f32 to vector<2x32xf32>
    %33 = arith.addf %31, %32 : vector<2x32xf32>
    %cst_26 = arith.constant 5.000000e-01 : f32
    %34 = vector.broadcast %cst_26 : f32 to vector<2x32xf32>
    %35 = arith.mulf %34, %33 : vector<2x32xf32>
    %36 = vector.extract_strided_slice %19 {offsets = [0, 64], sizes = [2, 32], strides = [1, 1]} : vector<2x128xf32> to vector<2x32xf32>
    %37 = math.tanh %36 : vector<2x32xf32>
    %38 = vector.extract_strided_slice %19 {offsets = [0, 96], sizes = [2, 32], strides = [1, 1]} : vector<2x128xf32> to vector<2x32xf32>
    %cst_27 = arith.constant 5.000000e-01 : f32
    %39 = vector.broadcast %cst_27 : f32 to vector<2x32xf32>
    %40 = arith.mulf %39, %38 : vector<2x32xf32>
    %41 = math.tanh %40 : vector<2x32xf32>
    %cst_28 = arith.constant 1.000000e+00 : f32
    %42 = vector.broadcast %cst_28 : f32 to vector<2x32xf32>
    %43 = arith.addf %41, %42 : vector<2x32xf32>
    %cst_29 = arith.constant 5.000000e-01 : f32
    %44 = vector.broadcast %cst_29 : f32 to vector<2x32xf32>
    %45 = arith.mulf %44, %43 : vector<2x32xf32>
    %46 = arith.mulf %35, %14 : vector<2x32xf32>
    %47 = arith.mulf %27, %37 : vector<2x32xf32>
    %48 = arith.addf %46, %47 : vector<2x32xf32>
    %49 = math.tanh %48 : vector<2x32xf32>
    %50 = arith.mulf %45, %49 : vector<2x32xf32>
    %cst_30 = arith.constant dense<0.000000e+00> : vector<2xf32>
    %51 = vector.multi_reduction <add>, %50, %cst_30 [1] : vector<2x32xf32> to vector<2xf32>
    %52 = vector.shape_cast %51 : vector<2xf32> to vector<2x1xf32>
    %cst_31 = arith.constant 3.200000e+01 : f32
    %53 = vector.broadcast %cst_31 : f32 to vector<2x1xf32>
    %54 = arith.divf %52, %53 : vector<2x1xf32>
    %55 = vector.broadcast %54 : vector<2x1xf32> to vector<2x32xf32>
    %56 = arith.subf %50, %55 : vector<2x32xf32>
    %57 = arith.mulf %56, %56 : vector<2x32xf32>
    %cst_32 = arith.constant dense<0.000000e+00> : vector<2xf32>
    %58 = vector.multi_reduction <add>, %57, %cst_32 [1] : vector<2x32xf32> to vector<2xf32>
    %59 = vector.shape_cast %58 : vector<2xf32> to vector<2x1xf32>
    %cst_33 = arith.constant 3.200000e+01 : f32
    %60 = vector.broadcast %cst_33 : f32 to vector<2x1xf32>
    %61 = arith.divf %59, %60 : vector<2x1xf32>
    %62 = vector.broadcast %54 : vector<2x1xf32> to vector<2x32xf32>
    %63 = arith.subf %50, %62 : vector<2x32xf32>
    %cst_34 = arith.constant 9.99999974E-6 : f32
    %64 = vector.broadcast %cst_34 : f32 to vector<2x1xf32>
    %65 = arith.addf %61, %64 : vector<2x1xf32>
    %66 = math.rsqrt %65 : vector<2x1xf32>
    %67 = vector.broadcast %66 : vector<2x1xf32> to vector<2x32xf32>
    %68 = arith.mulf %63, %67 : vector<2x32xf32>
    %69 = vector.broadcast %11 : vector<1x32xf32> to vector<2x32xf32>
    %70 = arith.mulf %68, %69 : vector<2x32xf32>
    %71 = vector.broadcast %12 : vector<1x32xf32> to vector<2x32xf32>
    %72 = arith.addf %70, %71 : vector<2x32xf32>
    %73 = arith.index_cast %15 : i32 to index
    %c0_35 = arith.constant 0 : index
    %74 = vector.load %arg7[%73, %c0_35] : memref<8x32xf32, #tpu.memory_space<vmem>>, vector<2x32xf32>
    tpu.vector_store %arg7[%73, %c0_35], %72 {strides = array<i32>} : memref<8x32xf32, #tpu.memory_space<vmem>>, vector<2x32xf32>,
    %c1_i32 = arith.constant 1 : i32
    %c2_i32_36 = arith.constant 2 : i32
    %75 = arith.muli %c1_i32, %c2_i32_36 : i32
    %76 = arith.index_cast %75 : i32 to index
    %c0_37 = arith.constant 0 : index
    %77 = vector.load %arg10[%76, %c0_37] : memref<8x128xf32, #tpu.memory_space<vmem>>, vector<2x128xf32>
    %cst_38 = arith.constant dense<0.000000e+00> : vector<2x128xf32>
    %78 = tpu.matmul %50, %10, %cst_38 {dimension_numbers = #tpu.dot_dimension_numbers<[1], [0], [0], [1], [0, 0, 1, 1], [], []>} : vector<2x32xf32>, vector<32x128xf32>, vector<2x128xf32> -> vector<2x128xf32>
    %79 = arith.addf %77, %78 : vector<2x128xf32>
    %80 = vector.extract_strided_slice %79 {offsets = [0, 0], sizes = [2, 32], strides = [1, 1]} : vector<2x128xf32> to vector<2x32xf32>
    %cst_39 = arith.constant 5.000000e-01 : f32
    %81 = vector.broadcast %cst_39 : f32 to vector<2x32xf32>
    %82 = arith.mulf %81, %80 : vector<2x32xf32>
    %83 = math.tanh %82 : vector<2x32xf32>
    %cst_40 = arith.constant 1.000000e+00 : f32
    %84 = vector.broadcast %cst_40 : f32 to vector<2x32xf32>
    %85 = arith.addf %83, %84 : vector<2x32xf32>
    %cst_41 = arith.constant 5.000000e-01 : f32
    %86 = vector.broadcast %cst_41 : f32 to vector<2x32xf32>
    %87 = arith.mulf %86, %85 : vector<2x32xf32>
    %88 = vector.extract_strided_slice %79 {offsets = [0, 32], sizes = [2, 32], strides = [1, 1]} : vector<2x128xf32> to vector<2x32xf32>
    %cst_42 = arith.constant 5.000000e-01 : f32
    %89 = vector.broadcast %cst_42 : f32 to vector<2x32xf32>
    %90 = arith.mulf %89, %88 : vector<2x32xf32>
    %91 = math.tanh %90 : vector<2x32xf32>
    %cst_43 = arith.constant 1.000000e+00 : f32
    %92 = vector.broadcast %cst_43 : f32 to vector<2x32xf32>
    %93 = arith.addf %91, %92 : vector<2x32xf32>
    %cst_44 = arith.constant 5.000000e-01 : f32
    %94 = vector.broadcast %cst_44 : f32 to vector<2x32xf32>
    %95 = arith.mulf %94, %93 : vector<2x32xf32>
    %96 = vector.extract_strided_slice %79 {offsets = [0, 64], sizes = [2, 32], strides = [1, 1]} : vector<2x128xf32> to vector<2x32xf32>
    %97 = math.tanh %96 : vector<2x32xf32>
    %98 = vector.extract_strided_slice %79 {offsets = [0, 96], sizes = [2, 32], strides = [1, 1]} : vector<2x128xf32> to vector<2x32xf32>
    %cst_45 = arith.constant 5.000000e-01 : f32
    %99 = vector.broadcast %cst_45 : f32 to vector<2x32xf32>
    %100 = arith.mulf %99, %98 : vector<2x32xf32>
    %101 = math.tanh %100 : vector<2x32xf32>
    %cst_46 = arith.constant 1.000000e+00 : f32
    %102 = vector.broadcast %cst_46 : f32 to vector<2x32xf32>
    %103 = arith.addf %101, %102 : vector<2x32xf32>
    %cst_47 = arith.constant 5.000000e-01 : f32
    %104 = vector.broadcast %cst_47 : f32 to vector<2x32xf32>
    %105 = arith.mulf %104, %103 : vector<2x32xf32>
    %106 = arith.mulf %95, %48 : vector<2x32xf32>
    %107 = arith.mulf %87, %97 : vector<2x32xf32>
    %108 = arith.addf %106, %107 : vector<2x32xf32>
    %109 = math.tanh %108 : vector<2x32xf32>
    %110 = arith.mulf %105, %109 : vector<2x32xf32>
    %cst_48 = arith.constant dense<0.000000e+00> : vector<2xf32>
    %111 = vector.multi_reduction <add>, %110, %cst_48 [1] : vector<2x32xf32> to vector<2xf32>
    %112 = vector.shape_cast %111 : vector<2xf32> to vector<2x1xf32>
    %cst_49 = arith.constant 3.200000e+01 : f32
    %113 = vector.broadcast %cst_49 : f32 to vector<2x1xf32>
    %114 = arith.divf %112, %113 : vector<2x1xf32>
    %115 = vector.broadcast %114 : vector<2x1xf32> to vector<2x32xf32>
    %116 = arith.subf %110, %115 : vector<2x32xf32>
    %117 = arith.mulf %116, %116 : vector<2x32xf32>
    %cst_50 = arith.constant dense<0.000000e+00> : vector<2xf32>
    %118 = vector.multi_reduction <add>, %117, %cst_50 [1] : vector<2x32xf32> to vector<2xf32>
    %119 = vector.shape_cast %118 : vector<2xf32> to vector<2x1xf32>
    %cst_51 = arith.constant 3.200000e+01 : f32
    %120 = vector.broadcast %cst_51 : f32 to vector<2x1xf32>
    %121 = arith.divf %119, %120 : vector<2x1xf32>
    %122 = vector.broadcast %114 : vector<2x1xf32> to vector<2x32xf32>
    %123 = arith.subf %110, %122 : vector<2x32xf32>
    %cst_52 = arith.constant 9.99999974E-6 : f32
    %124 = vector.broadcast %cst_52 : f32 to vector<2x1xf32>
    %125 = arith.addf %121, %124 : vector<2x1xf32>
    %126 = math.rsqrt %125 : vector<2x1xf32>
    %127 = vector.broadcast %126 : vector<2x1xf32> to vector<2x32xf32>
    %128 = arith.mulf %123, %127 : vector<2x32xf32>
    %129 = vector.broadcast %11 : vector<1x32xf32> to vector<2x32xf32>
    %130 = arith.mulf %128, %129 : vector<2x32xf32>
    %131 = vector.broadcast %12 : vector<1x32xf32> to vector<2x32xf32>
    %132 = arith.addf %130, %131 : vector<2x32xf32>
    %133 = arith.index_cast %75 : i32 to index
    %c0_53 = arith.constant 0 : index
    %134 = vector.load %arg7[%133, %c0_53] : memref<8x32xf32, #tpu.memory_space<vmem>>, vector<2x32xf32>
    tpu.vector_store %arg7[%133, %c0_53], %132 {strides = array<i32>} : memref<8x32xf32, #tpu.memory_space<vmem>>, vector<2x32xf32>,
    %c2_i32_54 = arith.constant 2 : i32
    %c2_i32_55 = arith.constant 2 : i32
    %135 = arith.muli %c2_i32_54, %c2_i32_55 : i32
    %136 = arith.index_cast %135 : i32 to index
    %c0_56 = arith.constant 0 : index
    %137 = vector.load %arg10[%136, %c0_56] : memref<8x128xf32, #tpu.memory_space<vmem>>, vector<2x128xf32>
    %cst_57 = arith.constant dense<0.000000e+00> : vector<2x128xf32>
    %138 = tpu.matmul %110, %10, %cst_57 {dimension_numbers = #tpu.dot_dimension_numbers<[1], [0], [0], [1], [0, 0, 1, 1], [], []>} : vector<2x32xf32>, vector<32x128xf32>, vector<2x128xf32> -> vector<2x128xf32>
    %139 = arith.addf %137, %138 : vector<2x128xf32>
    %140 = vector.extract_strided_slice %139 {offsets = [0, 0], sizes = [2, 32], strides = [1, 1]} : vector<2x128xf32> to vector<2x32xf32>
    %cst_58 = arith.constant 5.000000e-01 : f32
    %141 = vector.broadcast %cst_58 : f32 to vector<2x32xf32>
    %142 = arith.mulf %141, %140 : vector<2x32xf32>
    %143 = math.tanh %142 : vector<2x32xf32>
    %cst_59 = arith.constant 1.000000e+00 : f32
    %144 = vector.broadcast %cst_59 : f32 to vector<2x32xf32>
    %145 = arith.addf %143, %144 : vector<2x32xf32>
    %cst_60 = arith.constant 5.000000e-01 : f32
    %146 = vector.broadcast %cst_60 : f32 to vector<2x32xf32>
    %147 = arith.mulf %146, %145 : vector<2x32xf32>
    %148 = vector.extract_strided_slice %139 {offsets = [0, 32], sizes = [2, 32], strides = [1, 1]} : vector<2x128xf32> to vector<2x32xf32>
    %cst_61 = arith.constant 5.000000e-01 : f32
    %149 = vector.broadcast %cst_61 : f32 to vector<2x32xf32>
    %150 = arith.mulf %149, %148 : vector<2x32xf32>
    %151 = math.tanh %150 : vector<2x32xf32>
    %cst_62 = arith.constant 1.000000e+00 : f32
    %152 = vector.broadcast %cst_62 : f32 to vector<2x32xf32>
    %153 = arith.addf %151, %152 : vector<2x32xf32>
    %cst_63 = arith.constant 5.000000e-01 : f32
    %154 = vector.broadcast %cst_63 : f32 to vector<2x32xf32>
    %155 = arith.mulf %154, %153 : vector<2x32xf32>
    %156 = vector.extract_strided_slice %139 {offsets = [0, 64], sizes = [2, 32], strides = [1, 1]} : vector<2x128xf32> to vector<2x32xf32>
    %157 = math.tanh %156 : vector<2x32xf32>
    %158 = vector.extract_strided_slice %139 {offsets = [0, 96], sizes = [2, 32], strides = [1, 1]} : vector<2x128xf32> to vector<2x32xf32>
    %cst_64 = arith.constant 5.000000e-01 : f32
    %159 = vector.broadcast %cst_64 : f32 to vector<2x32xf32>
    %160 = arith.mulf %159, %158 : vector<2x32xf32>
    %161 = math.tanh %160 : vector<2x32xf32>
    %cst_65 = arith.constant 1.000000e+00 : f32
    %162 = vector.broadcast %cst_65 : f32 to vector<2x32xf32>
    %163 = arith.addf %161, %162 : vector<2x32xf32>
    %cst_66 = arith.constant 5.000000e-01 : f32
    %164 = vector.broadcast %cst_66 : f32 to vector<2x32xf32>
    %165 = arith.mulf %164, %163 : vector<2x32xf32>
    %166 = arith.mulf %155, %108 : vector<2x32xf32>
    %167 = arith.mulf %147, %157 : vector<2x32xf32>
    %168 = arith.addf %166, %167 : vector<2x32xf32>
    %169 = math.tanh %168 : vector<2x32xf32>
    %170 = arith.mulf %165, %169 : vector<2x32xf32>
    %cst_67 = arith.constant dense<0.000000e+00> : vector<2xf32>
    %171 = vector.multi_reduction <add>, %170, %cst_67 [1] : vector<2x32xf32> to vector<2xf32>
    %172 = vector.shape_cast %171 : vector<2xf32> to vector<2x1xf32>
    %cst_68 = arith.constant 3.200000e+01 : f32
    %173 = vector.broadcast %cst_68 : f32 to vector<2x1xf32>
    %174 = arith.divf %172, %173 : vector<2x1xf32>
    %175 = vector.broadcast %174 : vector<2x1xf32> to vector<2x32xf32>
    %176 = arith.subf %170, %175 : vector<2x32xf32>
    %177 = arith.mulf %176, %176 : vector<2x32xf32>
    %cst_69 = arith.constant dense<0.000000e+00> : vector<2xf32>
    %178 = vector.multi_reduction <add>, %177, %cst_69 [1] : vector<2x32xf32> to vector<2xf32>
    %179 = vector.shape_cast %178 : vector<2xf32> to vector<2x1xf32>
    %cst_70 = arith.constant 3.200000e+01 : f32
    %180 = vector.broadcast %cst_70 : f32 to vector<2x1xf32>
    %181 = arith.divf %179, %180 : vector<2x1xf32>
    %182 = vector.broadcast %174 : vector<2x1xf32> to vector<2x32xf32>
    %183 = arith.subf %170, %182 : vector<2x32xf32>
    %cst_71 = arith.constant 9.99999974E-6 : f32
    %184 = vector.broadcast %cst_71 : f32 to vector<2x1xf32>
    %185 = arith.addf %181, %184 : vector<2x1xf32>
    %186 = math.rsqrt %185 : vector<2x1xf32>
    %187 = vector.broadcast %186 : vector<2x1xf32> to vector<2x32xf32>
    %188 = arith.mulf %183, %187 : vector<2x32xf32>
    %189 = vector.broadcast %11 : vector<1x32xf32> to vector<2x32xf32>
    %190 = arith.mulf %188, %189 : vector<2x32xf32>
    %191 = vector.broadcast %12 : vector<1x32xf32> to vector<2x32xf32>
    %192 = arith.addf %190, %191 : vector<2x32xf32>
    %193 = arith.index_cast %135 : i32 to index
    %c0_72 = arith.constant 0 : index
    %194 = vector.load %arg7[%193, %c0_72] : memref<8x32xf32, #tpu.memory_space<vmem>>, vector<2x32xf32>
    tpu.vector_store %arg7[%193, %c0_72], %192 {strides = array<i32>} : memref<8x32xf32, #tpu.memory_space<vmem>>, vector<2x32xf32>,
    %c3_i32 = arith.constant 3 : i32
    %c2_i32_73 = arith.constant 2 : i32
    %195 = arith.muli %c3_i32, %c2_i32_73 : i32
    %196 = arith.index_cast %195 : i32 to index
    %c0_74 = arith.constant 0 : index
    %197 = vector.load %arg10[%196, %c0_74] : memref<8x128xf32, #tpu.memory_space<vmem>>, vector<2x128xf32>
    %cst_75 = arith.constant dense<0.000000e+00> : vector<2x128xf32>
    %198 = tpu.matmul %170, %10, %cst_75 {dimension_numbers = #tpu.dot_dimension_numbers<[1], [0], [0], [1], [0, 0, 1, 1], [], []>} : vector<2x32xf32>, vector<32x128xf32>, vector<2x128xf32> -> vector<2x128xf32>
    %199 = arith.addf %197, %198 : vector<2x128xf32>
    %200 = vector.extract_strided_slice %199 {offsets = [0, 0], sizes = [2, 32], strides = [1, 1]} : vector<2x128xf32> to vector<2x32xf32>
    %cst_76 = arith.constant 5.000000e-01 : f32
    %201 = vector.broadcast %cst_76 : f32 to vector<2x32xf32>
    %202 = arith.mulf %201, %200 : vector<2x32xf32>
    %203 = math.tanh %202 : vector<2x32xf32>
    %cst_77 = arith.constant 1.000000e+00 : f32
    %204 = vector.broadcast %cst_77 : f32 to vector<2x32xf32>
    %205 = arith.addf %203, %204 : vector<2x32xf32>
    %cst_78 = arith.constant 5.000000e-01 : f32
    %206 = vector.broadcast %cst_78 : f32 to vector<2x32xf32>
    %207 = arith.mulf %206, %205 : vector<2x32xf32>
    %208 = vector.extract_strided_slice %199 {offsets = [0, 32], sizes = [2, 32], strides = [1, 1]} : vector<2x128xf32> to vector<2x32xf32>
    %cst_79 = arith.constant 5.000000e-01 : f32
    %209 = vector.broadcast %cst_79 : f32 to vector<2x32xf32>
    %210 = arith.mulf %209, %208 : vector<2x32xf32>
    %211 = math.tanh %210 : vector<2x32xf32>
    %cst_80 = arith.constant 1.000000e+00 : f32
    %212 = vector.broadcast %cst_80 : f32 to vector<2x32xf32>
    %213 = arith.addf %211, %212 : vector<2x32xf32>
    %cst_81 = arith.constant 5.000000e-01 : f32
    %214 = vector.broadcast %cst_81 : f32 to vector<2x32xf32>
    %215 = arith.mulf %214, %213 : vector<2x32xf32>
    %216 = vector.extract_strided_slice %199 {offsets = [0, 64], sizes = [2, 32], strides = [1, 1]} : vector<2x128xf32> to vector<2x32xf32>
    %217 = math.tanh %216 : vector<2x32xf32>
    %218 = vector.extract_strided_slice %199 {offsets = [0, 96], sizes = [2, 32], strides = [1, 1]} : vector<2x128xf32> to vector<2x32xf32>
    %cst_82 = arith.constant 5.000000e-01 : f32
    %219 = vector.broadcast %cst_82 : f32 to vector<2x32xf32>
    %220 = arith.mulf %219, %218 : vector<2x32xf32>
    %221 = math.tanh %220 : vector<2x32xf32>
    %cst_83 = arith.constant 1.000000e+00 : f32
    %222 = vector.broadcast %cst_83 : f32 to vector<2x32xf32>
    %223 = arith.addf %221, %222 : vector<2x32xf32>
    %cst_84 = arith.constant 5.000000e-01 : f32
    %224 = vector.broadcast %cst_84 : f32 to vector<2x32xf32>
    %225 = arith.mulf %224, %223 : vector<2x32xf32>
    %226 = arith.mulf %215, %168 : vector<2x32xf32>
    %227 = arith.mulf %207, %217 : vector<2x32xf32>
    %228 = arith.addf %226, %227 : vector<2x32xf32>
    %229 = math.tanh %228 : vector<2x32xf32>
    %230 = arith.mulf %225, %229 : vector<2x32xf32>
    %cst_85 = arith.constant dense<0.000000e+00> : vector<2xf32>
    %231 = vector.multi_reduction <add>, %230, %cst_85 [1] : vector<2x32xf32> to vector<2xf32>
    %232 = vector.shape_cast %231 : vector<2xf32> to vector<2x1xf32>
    %cst_86 = arith.constant 3.200000e+01 : f32
    %233 = vector.broadcast %cst_86 : f32 to vector<2x1xf32>
    %234 = arith.divf %232, %233 : vector<2x1xf32>
    %235 = vector.broadcast %234 : vector<2x1xf32> to vector<2x32xf32>
    %236 = arith.subf %230, %235 : vector<2x32xf32>
    %237 = arith.mulf %236, %236 : vector<2x32xf32>
    %cst_87 = arith.constant dense<0.000000e+00> : vector<2xf32>
    %238 = vector.multi_reduction <add>, %237, %cst_87 [1] : vector<2x32xf32> to vector<2xf32>
    %239 = vector.shape_cast %238 : vector<2xf32> to vector<2x1xf32>
    %cst_88 = arith.constant 3.200000e+01 : f32
    %240 = vector.broadcast %cst_88 : f32 to vector<2x1xf32>
    %241 = arith.divf %239, %240 : vector<2x1xf32>
    %242 = vector.broadcast %234 : vector<2x1xf32> to vector<2x32xf32>
    %243 = arith.subf %230, %242 : vector<2x32xf32>
    %cst_89 = arith.constant 9.99999974E-6 : f32
    %244 = vector.broadcast %cst_89 : f32 to vector<2x1xf32>
    %245 = arith.addf %241, %244 : vector<2x1xf32>
    %246 = math.rsqrt %245 : vector<2x1xf32>
    %247 = vector.broadcast %246 : vector<2x1xf32> to vector<2x32xf32>
    %248 = arith.mulf %243, %247 : vector<2x32xf32>
    %249 = vector.broadcast %11 : vector<1x32xf32> to vector<2x32xf32>
    %250 = arith.mulf %248, %249 : vector<2x32xf32>
    %251 = vector.broadcast %12 : vector<1x32xf32> to vector<2x32xf32>
    %252 = arith.addf %250, %251 : vector<2x32xf32>
    %253 = arith.index_cast %195 : i32 to index
    %c0_90 = arith.constant 0 : index
    %254 = vector.load %arg7[%253, %c0_90] : memref<8x32xf32, #tpu.memory_space<vmem>>, vector<2x32xf32>
    tpu.vector_store %arg7[%253, %c0_90], %252 {strides = array<i32>} : memref<8x32xf32, #tpu.memory_space<vmem>>, vector<2x32xf32>,
    %c4_i32 = arith.constant 4 : i32
    %c0_91 = arith.constant 0 : index
    %c0_92 = arith.constant 0 : index
    %255 = vector.load %arg8[%c0_91, %c0_92] : memref<2x32xf32, #tpu.memory_space<vmem>>, vector<2x32xf32>
    tpu.vector_store %arg8[%c0_91, %c0_92], %230 {strides = array<i32>} : memref<2x32xf32, #tpu.memory_space<vmem>>, vector<2x32xf32>,
    %c0_93 = arith.constant 0 : index
    %c0_94 = arith.constant 0 : index
    %256 = vector.load %arg9[%c0_93, %c0_94] : memref<2x32xf32, #tpu.memory_space<vmem>>, vector<2x32xf32>
    tpu.vector_store %arg9[%c0_93, %c0_94], %228 {strides = array<i32>} : memref<2x32xf32, #tpu.memory_space<vmem>>, vector<2x32xf32>,
    return
  }
  func.func @transform_0(%arg0: i32) -> (i32, i32) {
    %c0_i32 = arith.constant 0 : i32
    %c0_i32_0 = arith.constant 0 : i32
    return %arg0, %c0_i32 : i32, i32
  }
  func.func @transform_1(%arg0: i32) -> (i32, i32) {
    %c0_i32 = arith.constant 0 : i32
    %c0_i32_0 = arith.constant 0 : i32
    %c0_i32_1 = arith.constant 0 : i32
    return %c0_i32, %c0_i32_0 : i32, i32
  }
  func.func @transform_2(%arg0: i32) -> (i32, i32) {
    %c0_i32 = arith.constant 0 : i32
    %c0_i32_0 = arith.constant 0 : i32
    %c0_i32_1 = arith.constant 0 : i32
    return %c0_i32, %c0_i32_0 : i32, i32
  }
  func.func @transform_3(%arg0: i32) -> (i32, i32) {
    %c0_i32 = arith.constant 0 : i32
    %c0_i32_0 = arith.constant 0 : i32
    %c0_i32_1 = arith.constant 0 : i32
    return %c0_i32, %c0_i32_0 : i32, i32
  }
  func.func @transform_4(%arg0: i32) -> (i32, i32) {
    %c0_i32 = arith.constant 0 : i32
    %c0_i32_0 = arith.constant 0 : i32
    %c0_i32_1 = arith.constant 0 : i32
    return %c0_i32, %c0_i32_0 : i32, i32
  }
  func.func @transform_5(%arg0: i32) -> (i32, i32) {
    %c0_i32 = arith.constant 0 : i32
    %c0_i32_0 = arith.constant 0 : i32
    %c0_i32_1 = arith.constant 0 : i32
    return %c0_i32, %c0_i32_0 : i32, i32
  }
  func.func @transform_6(%arg0: i32) -> (i32, i32) {
    %c0_i32 = arith.constant 0 : i32
    %c0_i32_0 = arith.constant 0 : i32
    return %arg0, %c0_i32 : i32, i32
  }
}

</mosaic_0001>

<llo_original>
// kernel: tpu_custom_call.1
$region0: #{tpu_custom_call.1}
  #allocation0 [shape = 'u32[]', space=smem, size = 0x4, offset = 0x4, fixed_abs, tag = 'smem constant byte address 0x4 - core index']
  #allocation1 [shape = 'u32[144,128]{1,0:T(1,128)}', space=vmem, size = 0x12000, scoped, tag = 'internal scratch']
  #allocation2 [shape = 'f32[2,32]{1,0:T(2,128)}', space=vmem, size = 0x400, scoped, tag = 'scratch operand']
  #allocation3 [shape = 'f32[2,32]{1,0:T(2,128)}', space=vmem, size = 0x400, scoped, tag = 'scratch operand']
  #allocation4 [shape = 'f32[8,128]{1,0:T(8,128)}', space=vmem, size = 0x1000, scoped, tag = 'scratch operand']
  %s0 = inlined_call_operand.hbm [shape: f32[16,16], index: 0, kind: input, shape index: {}]
  %s1 = inlined_call_operand.hbm [shape: f32[16,128], index: 1, kind: input, shape index: {}]
  %s2 = inlined_call_operand.hbm [shape: f32[32,128], index: 2, kind: input, shape index: {}]
  %s3 = inlined_call_operand.vmem [shape: f32[1,128], index: 3, kind: input, shape index: {}]
  %s4 = inlined_call_operand.vmem [shape: f32[1,32], index: 4, kind: input, shape index: {}]
  %s5 = inlined_call_operand.vmem [shape: f32[1,32], index: 5, kind: input, shape index: {}]
  %s6 = inlined_call_operand.hbm [shape: f32[16,32], index: 6, kind: output, shape index: {}]
  %s7 = sld [smem:[#allocation0]]
  $region73: #{tpu_custom_call.1} parent=0
    _
  %s9 = ssub.s32 1, %s7
  %s10 = scalar_select 0, %s9, %s7
  $region1: #{tpu_custom_call.1} parent=0
    #allocation5 [shape = 'u8[8192]{0}', space=vmem, size = 0x2000, scoped, tag = 'input window, operand 0']
    #allocation6 [shape = 's32[2]{0}', space=sflag, size = 0x8, scoped, tag = 'scoped memory for tpu_custom_call.1']
    #allocation7 [shape = 's32[2]{0}', space=sflag, size = 0x8, scoped, tag = 'scoped memory for tpu_custom_call.1']
    #allocation8 [shape = 'u8[8192]{0}', space=vmem, size = 0x2000, scoped, tag = 'input window, operand 1, single buffered']
    #allocation9 [shape = 's32[1]{0}', space=sflag, size = 0x4, scoped, tag = 'scoped memory for tpu_custom_call.1']
    #allocation10 [shape = 'u8[16384]{0}', space=vmem, size = 0x4000, scoped, tag = 'input window, operand 2, single buffered']
    #allocation11 [shape = 'u8[8192]{0}', space=vmem, size = 0x2000, scoped, tag = 'output window, operand 0']
    %11 = vsyncpa [#allocation6], 0
    %s12 = scalar_lea.sflag [#allocation6], 1
    %13 = vsyncpa %s12, 0
    %14 = vsyncpa [#allocation9], 0
    %15 = vsyncpa [#allocation7], 0
    %s16 = scalar_lea.sflag [#allocation7], 1
    %17 = vsyncpa %s16, 0
    loop: start=0, step=1, limit=4
    $region2: #{tpu_custom_call.1} parent=1 // loop_pre_header
      _
    $region3: #{tpu_custom_call.1} parent=1 // loop_header
      %s19 = sphi 0, %s23
      %p20 = scmp.ge.s32.totalorder %s19, 4
      %s29 = sphi 0, %s31
      %s32 = sphi 0, %s29
      %s33 = sphi 0, %s32
      %s49 = sphi 0, %s33
      %s53 = sphi 0, %s53
      %s55 = sphi 0, %s53
      %s56 = sphi 0, %s55
      %s70 = sphi 0, %s56
      %s74 = sphi 0, %s74
      %s76 = sphi 0, %s74
      %s77 = sphi 0, %s76
      %s91 = sphi 0, %s77
      %s95 = sphi 0, %s95
      %s97 = sphi 0, %s95
      %s98 = sphi 0, %s97
      %s112 = sphi 0, %s98
      %s116 = sphi 0, %s116
      %s118 = sphi 0, %s116
      %s119 = sphi 0, %s118
      %s133 = sphi 0, %s119
      %s137 = sphi 0, %s137
      %s139 = sphi 0, %s137
      %s140 = sphi 0, %s139
      %s154 = sphi 0, %s140
      %s160 = sphi 0, %s162
      %s163 = sphi 0, %s160
      %s164 = sphi 0, %s163
      %s180 = sphi 0, %s164
    $region4: #{tpu_custom_call.1} parent=1 // loop_header_branch
      %22 = sbr.rel (%p20) target = $region8
    $region5: #{tpu_custom_call.1} parent=1 // loop_body
      %s24 = ssub.s32 %s19, 1
      %s25 = ssub.s32 %s19, 2
      %s26 = sadd.s32 %s19, 1
      %s27 = ssub.s32 %s19, %s26
      %p28 = scmp.eq.s32.totalorder %s27, 0
      %s30 = sadd.s32 %s29, 1
      %s31 = scalar_select %p28, %s29, %s30
      %p34 = pneg %p28
      %p35 = scmp.eq.s32.totalorder %s19, 1
      %p36 = por %p34, %p35
      %p37 = scmp.ne.s32.totalorder %s29, %s32
      %p38 = scmp.eq.s32.totalorder %s19, 0
      %p39 = por %p37, %p38
      %p40 = scmp.ne.s32.totalorder %s29, %s32
      %p41 = scmp.eq.s32.totalorder %s24, 1
      %p42 = por %p40, %p41
      %p43 = scmp.ne.s32.totalorder %s32, %s33
      %p44 = scmp.eq.s32.totalorder %s24, 0
      %p45 = por %p43, %p44
      %p46 = scmp.ne.s32.totalorder %s32, %s33
      %p47 = scmp.eq.s32.totalorder %s25, 1
      %p48 = por %p46, %p47
      %p50 = scmp.ne.s32.totalorder %s33, %s49
      %p51 = scmp.eq.s32.totalorder %s25, 0
      %p52 = por %p50, %p51
      %s54 = sadd.s32 %s53, 1
      %p57 = scmp.eq.s32.totalorder %s19, 1
      %p58 = scmp.ne.s32.totalorder %s53, %s55
      %p59 = scmp.eq.s32.totalorder %s19, 0
      %p60 = por %p58, %p59
      %p61 = scmp.ne.s32.totalorder %s53, %s55
      %p62 = scmp.eq.s32.totalorder %s24, 1
      %p63 = por %p61, %p62
      %p64 = scmp.ne.s32.totalorder %s55, %s56
      %p65 = scmp.eq.s32.totalorder %s24, 0
      %p66 = por %p64, %p65
      %p67 = scmp.ne.s32.totalorder %s55, %s56
      %p68 = scmp.eq.s32.totalorder %s25, 1
      %p69 = por %p67, %p68
      %p71 = scmp.ne.s32.totalorder %s56, %s70
      %p72 = scmp.eq.s32.totalorder %s25, 0
      %p73 = por %p71, %p72
      %s75 = sadd.s32 %s74, 1
      %p78 = scmp.eq.s32.totalorder %s19, 1
      %p79 = scmp.ne.s32.totalorder %s74, %s76
      %p80 = scmp.eq.s32.totalorder %s19, 0
      %p81 = por %p79, %p80
      %p82 = scmp.ne.s32.totalorder %s74, %s76
      %p83 = scmp.eq.s32.totalorder %s24, 1
      %p84 = por %p82, %p83
      %p85 = scmp.ne.s32.totalorder %s76, %s77
      %p86 = scmp.eq.s32.totalorder %s24, 0
      %p87 = por %p85, %p86
      %p88 = scmp.ne.s32.totalorder %s76, %s77
      %p89 = scmp.eq.s32.totalorder %s25, 1
      %p90 = por %p88, %p89
      %p92 = scmp.ne.s32.totalorder %s77, %s91
      %p93 = scmp.eq.s32.totalorder %s25, 0
      %p94 = por %p92, %p93
      %s96 = sadd.s32 %s95, 1
      %p99 = scmp.eq.s32.totalorder %s19, 1
      %p100 = scmp.ne.s32.totalorder %s95, %s97
      %p101 = scmp.eq.s32.totalorder %s19, 0
      %p102 = por %p100, %p101
      %p103 = scmp.ne.s32.totalorder %s95, %s97
      %p104 = scmp.eq.s32.totalorder %s24, 1
      %p105 = por %p103, %p104
      %p106 = scmp.ne.s32.totalorder %s97, %s98
      %p107 = scmp.eq.s32.totalorder %s24, 0
      %p108 = por %p106, %p107
      %p109 = scmp.ne.s32.totalorder %s97, %s98
      %p110 = scmp.eq.s32.totalorder %s25, 1
      %p111 = por %p109, %p110
      %p113 = scmp.ne.s32.totalorder %s98, %s112
      %p114 = scmp.eq.s32.totalorder %s25, 0
      %p115 = por %p113, %p114
      %s117 = sadd.s32 %s116, 1
      %p120 = scmp.eq.s32.totalorder %s19, 1
      %p121 = scmp.ne.s32.totalorder %s116, %s118
      %p122 = scmp.eq.s32.totalorder %s19, 0
      %p123 = por %p121, %p122
      %p124 = scmp.ne.s32.totalorder %s116, %s118
      %p125 = scmp.eq.s32.totalorder %s24, 1
      %p126 = por %p124, %p125
      %p127 = scmp.ne.s32.totalorder %s118, %s119
      %p128 = scmp.eq.s32.totalorder %s24, 0
      %p129 = por %p127, %p128
      %p130 = scmp.ne.s32.totalorder %s118, %s119
      %p131 = scmp.eq.s32.totalorder %s25, 1
      %p132 = por %p130, %p131
      %p134 = scmp.ne.s32.totalorder %s119, %s133
      %p135 = scmp.eq.s32.totalorder %s25, 0
      %p136 = por %p134, %p135
      %s138 = sadd.s32 %s137, 1
      %p141 = scmp.eq.s32.totalorder %s19, 1
      %p142 = scmp.ne.s32.totalorder %s137, %s139
      %p143 = scmp.eq.s32.totalorder %s19, 0
      %p144 = por %p142, %p143
      %p145 = scmp.ne.s32.totalorder %s137, %s139
      %p146 = scmp.eq.s32.totalorder %s24, 1
      %p147 = por %p145, %p146
      %p148 = scmp.ne.s32.totalorder %s139, %s140
      %p149 = scmp.eq.s32.totalorder %s24, 0
      %p150 = por %p148, %p149
      %p151 = scmp.ne.s32.totalorder %s139, %s140
      %p152 = scmp.eq.s32.totalorder %s25, 1
      %p153 = por %p151, %p152
      %p155 = scmp.ne.s32.totalorder %s140, %s154
      %p156 = scmp.eq.s32.totalorder %s25, 0
      %p157 = por %p155, %p156
      %s158 = ssub.s32 %s19, %s26
      %p159 = scmp.eq.s32.totalorder %s158, 0
      %s161 = sadd.s32 %s160, 1
      %s162 = scalar_select %p159, %s160, %s161
      %p165 = pneg %p159
      %p166 = scmp.eq.s32.totalorder %s19, 1
      %p167 = por %p165, %p166
      %p168 = scmp.ne.s32.totalorder %s160, %s163
      %p169 = scmp.eq.s32.totalorder %s19, 0
      %p170 = por %p168, %p169
      %p171 = scmp.ne.s32.totalorder %s160, %s163
      %p172 = scmp.eq.s32.totalorder %s24, 1
      %p173 = por %p171, %p172
      %p174 = scmp.ne.s32.totalorder %s163, %s164
      %p175 = scmp.eq.s32.totalorder %s24, 0
      %p176 = por %p174, %p175
      %p177 = scmp.ne.s32.totalorder %s163, %s164
      %p178 = scmp.eq.s32.totalorder %s25, 1
      %p179 = por %p177, %p178
      %p181 = scmp.ne.s32.totalorder %s164, %s180
      %p182 = scmp.eq.s32.totalorder %s25, 0
      %p183 = por %p181, %p182
      %p184 = scmp.le.s32.totalorder 1, %s19
      %p185 = scmp.lt.s32.totalorder %s19, 3
      %p186 = pnand %p184, %p185
      %p187 = pneg %p186
      // Predicated region
      $region9: #{tpu_custom_call.1} parent=5 // pred_check
        _
      $region10: #{tpu_custom_call.1} parent=5 // pred_check_branch
        %189 = sbr.rel (%p186) target = $region12
      $region11: #{tpu_custom_call.1} parent=5 // pred_region
        %s190 = ssub.s32 %s19, 1
        // Predicated region
        $region13: #{tpu_custom_call.1} parent=11 // pred_check
          %p191 = pneg %p66
        $region14: #{tpu_custom_call.1} parent=11 // pred_check_branch
          %193 = sbr.rel (%p191) target = $region16
        $region15: #{tpu_custom_call.1} parent=11 // pred_region
          %s195 = ssub.s32 256, 256
          %196 = vsyncadd [#allocation9], %s195
          %s197 = sshll.u32 [#allocation8], 4
          %s198 = int_to_ptr.vmem [resolvable:$true] %s197
          %203 = dma.hbm_to_vmem [thread:$0]  %s1, 256, %s198, [#allocation9], 128, 128, 8
        $region16: #{tpu_custom_call.1} parent=11 // pred_fallthru
          _
        // Predicated region
        $region17: #{tpu_custom_call.1} parent=11 // pred_check
          %p204 = pneg %p87
        $region18: #{tpu_custom_call.1} parent=11 // pred_check_branch
          %206 = sbr.rel (%p204) target = $region20
        $region19: #{tpu_custom_call.1} parent=11 // pred_region
          %s208 = ssub.s32 512, 512
          %209 = vsyncadd [#allocation9], %s208
          %s210 = sshll.u32 [#allocation10], 4
          %s211 = int_to_ptr.vmem [resolvable:$true] %s210
          %216 = dma.hbm_to_vmem [thread:$0]  %s2, 512, %s211, [#allocation9], 128, 128, 8
        $region20: #{tpu_custom_call.1} parent=11 // pred_fallthru
          _
        // Predicated region
        $region21: #{tpu_custom_call.1} parent=11 // pred_check
          %p217 = pneg %p108
        $region22: #{tpu_custom_call.1} parent=11 // pred_check_branch
          %219 = sbr.rel (%p217) target = $region24
        $region23: #{tpu_custom_call.1} parent=11 // pred_region
          _
        $region24: #{tpu_custom_call.1} parent=11 // pred_fallthru
          _
        // Predicated region
        $region25: #{tpu_custom_call.1} parent=11 // pred_check
          %p220 = pneg %p129
        $region26: #{tpu_custom_call.1} parent=11 // pred_check_branch
          %222 = sbr.rel (%p220) target = $region28
        $region27: #{tpu_custom_call.1} parent=11 // pred_region
          _
        $region28: #{tpu_custom_call.1} parent=11 // pred_fallthru
          _
        // Predicated region
        $region29: #{tpu_custom_call.1} parent=11 // pred_check
          %p223 = pneg %p150
        $region30: #{tpu_custom_call.1} parent=11 // pred_check_branch
          %225 = sbr.rel (%p223) target = $region32
        $region31: #{tpu_custom_call.1} parent=11 // pred_region
          _
        $region32: #{tpu_custom_call.1} parent=11 // pred_fallthru
          _
      $region12: #{tpu_custom_call.1} parent=5 // pred_fallthru
        _
      %p226 = scmp.lt.s32.totalorder %s19, 2
      // Predicated region
      $region33: #{tpu_custom_call.1} parent=5 // pred_check
        %p227 = pneg %p226
      $region34: #{tpu_custom_call.1} parent=5 // pred_check_branch
        %229 = sbr.rel (%p227) target = $region36
      $region35: #{tpu_custom_call.1} parent=5 // pred_region
        // Predicated region
        $region37: #{tpu_custom_call.1} parent=35 // pred_check
          %p230 = pneg %p39
        $region38: #{tpu_custom_call.1} parent=35 // pred_check_branch
          %232 = sbr.rel (%p230) target = $region40
        $region39: #{tpu_custom_call.1} parent=35 // pred_region
          %s233 = sand.u32 %s29, 1
          %s234 = scalar_lea.sflag [#allocation6], %s233
          %s235 = sand.u32 %s29, 1
          %s236 = smul.addr %s235, 8
          %s237 = scalar_lea.vmem [#allocation5], %s236
          %s239 = ssub.s32 128, 128
          %240 = vsyncadd %s234, %s239
          %s241 = smul.addr %s19, 128
          %s242 = scalar_lea.hbm %s0, %s241
          %s244 = sshll.u32 %s237, 4
          %s245 = int_to_ptr.vmem [resolvable:$true] %s244
          %247 = dma.hbm_to_vmem [thread:$0]  %s242, 128, %s245, %s234
        $region40: #{tpu_custom_call.1} parent=35 // pred_fallthru
          _
      $region36: #{tpu_custom_call.1} parent=5 // pred_fallthru
        _
      %p248 = scmp.le.s32.totalorder 1, %s19
      %p249 = scmp.lt.s32.totalorder %s19, 3
      %p250 = pnand %p248, %p249
      %p251 = pneg %p250
      // Predicated region
      $region41: #{tpu_custom_call.1} parent=5 // pred_check
        _
      $region42: #{tpu_custom_call.1} parent=5 // pred_check_branch
        %253 = sbr.rel (%p250) target = $region44
      $region43: #{tpu_custom_call.1} parent=5 // pred_region
        %s254 = ssub.s32 %s19, 1
        %s255 = sand.u32 %s32, 1
        %s256 = scalar_lea.sflag [#allocation6], %s255
        %s257 = sand.u32 %s32, 1
        %s258 = smul.addr %s257, 8
        %s259 = scalar_lea.vmem [#allocation5], %s258
        // Predicated region
        $region45: #{tpu_custom_call.1} parent=43 // pred_check
          %p260 = pneg %p45
        $region46: #{tpu_custom_call.1} parent=43 // pred_check_branch
          %262 = sbr.rel (%p260) target = $region48
        $region47: #{tpu_custom_call.1} parent=43 // pred_region
          %263 = dma.done %s256, 128
        $region48: #{tpu_custom_call.1} parent=43 // pred_fallthru
          _
        // Predicated region
        $region49: #{tpu_custom_call.1} parent=43 // pred_check
          %p264 = pneg %p66
        $region50: #{tpu_custom_call.1} parent=43 // pred_check_branch
          %266 = sbr.rel (%p264) target = $region52
        $region51: #{tpu_custom_call.1} parent=43 // pred_region
          %267 = dma.done [#allocation9], 256
        $region52: #{tpu_custom_call.1} parent=43 // pred_fallthru
          _
        // Predicated region
        $region53: #{tpu_custom_call.1} parent=43 // pred_check
          %p268 = pneg %p87
        $region54: #{tpu_custom_call.1} parent=43 // pred_check_branch
          %270 = sbr.rel (%p268) target = $region56
        $region55: #{tpu_custom_call.1} parent=43 // pred_region
          %271 = dma.done [#allocation9], 512
        $region56: #{tpu_custom_call.1} parent=43 // pred_fallthru
          _
        %s272 = sand.u32 %s32, 1
        %s273 = scalar_lea.sflag [#allocation6], %s272
        %s274 = sand.u32 %s32, 1
        %s275 = smul.addr %s274, 8
        %s276 = scalar_lea.vmem [#allocation5], %s275
        %p277 = pneg %p45
        %p278 = pneg %p42
        %p279 = pneg %p66
        %p280 = pneg %p63
        %p281 = pneg %p87
        %p282 = pneg %p84
        %p283 = pneg %p108
        %p284 = pneg %p105
        %p285 = pneg %p129
        %p286 = pneg %p126
        %p287 = pneg %p150
        %p288 = pneg %p147
        %p289 = pneg %p176
        %p290 = pneg %p173
        %s291 = sand.u32 %s163, 1
        %s292 = scalar_lea.sflag [#allocation7], %s291
        %s293 = sand.u32 %s163, 1
        %s294 = smul.addr %s293, 8
        %s295 = scalar_lea.vmem [#allocation11], %s294
        %p296 = scmp.eq.s32.totalorder %s24, 0
        // Predicated region
        $region57: #{tpu_custom_call.1} parent=43 // pred_check
          %p297 = pneg %p296
        $region58: #{tpu_custom_call.1} parent=43 // pred_check_branch
          %299 = sbr.rel (%p297) target = $region60
        $region59: #{tpu_custom_call.1} parent=43 // pred_region
          %vm300 = vcmask 254976
          %301 = vst.msk [vmem:[#allocation2] sm:$0x3] %vm300, 0.0
          %302 = vst.msk [vmem:[#allocation3] sm:$0x3] %vm300, 0.0
        $region60: #{tpu_custom_call.1} parent=43 // pred_fallthru
          _
        %v303 = vld [vmem:[%s259] sm:$0xff]
        %v304 = vld [vmem:[#allocation8] sm:$0xff]
        %v305 = vld [vmem:[#allocation8 + $0x8] sm:$0xff]
        %v306 = vld [vmem:[%s3] sm:$0x1]
        %v308 = vlaneseq
        %v309 = vshrl.u32 %v308, 7
        %v310 = vsub.s32 0, %v309
        %v311 = vrot.slane %v306, %v310
        %vm313 = vcmask 130048
        %v315 = vsel %vm313, %v303, 0
        %317 = vmatprep.subr.mxu0 0.0
        %318 = vmatpush1.msra.mxu0 %v304
        %319 = vmatprep.subr.mxu0 0.0
        %320 = vmatpush1.msra.mxu0 %v305
        %321 = vmatprep.subr.mxu0 0.0
        %322 = vmatpush1.msra.mxu0 0.0
        %323 = vmatprep.subr.mxu0 0.0
        %324 = vmatpush1.msra.mxu0 0.0
        %325 = vmatprep.subr.mxu0 0.0
        %326 = vmatpush1.msra.mxu0 0.0
        %327 = vmatprep.subr.mxu0 0.0
        %328 = vmatpush1.msra.mxu0 0.0
        %329 = vmatprep.subr.mxu0 0.0
        %330 = vmatpush1.msra.mxu0 0.0
        %331 = vmatprep.subr.mxu0 0.0
        %332 = vmatpush1.msra.mxu0 0.0
        %333 = vmatprep.subr.mxu0 0.0
        %334 = vmatpush1.msra.mxu0 0.0
        %335 = vmatprep.subr.mxu0 0.0
        %336 = vmatpush1.msra.mxu0 0.0
        %337 = vmatprep.subr.mxu0 0.0
        %338 = vmatpush1.msra.mxu0 0.0
        %339 = vmatprep.subr.mxu0 0.0
        %340 = vmatpush1.msra.mxu0 0.0
        %341 = vmatprep.subr.mxu0 0.0
        %342 = vmatpush1.msra.mxu0 0.0
        %343 = vmatprep.subr.mxu0 0.0
        %344 = vmatpush1.msra.mxu0 0.0
        %345 = vmatprep.subr.mxu0 0.0
        %346 = vmatpush1.msra.mxu0 0.0
        %347 = vmatprep.subr.mxu0 0.0
        %348 = vmatpush1.msra.mxu0 0.0
        %349 = vmatprep.subr.mxu0 0.0
        %350 = vmatpush1.msra.mxu0 0.0
        %351 = vmatprep.subr.mxu0 0.0
        %352 = vmatpush1.msra.mxu0 0.0
        %353 = vmatprep.subr.mxu0 0.0
        %354 = vmatpush1.msra.mxu0 0.0
        %355 = vmatprep.subr.mxu0 0.0
        %356 = vmatpush1.msra.mxu0 0.0
        %357 = vmatprep.subr.mxu0 0.0
        %358 = vmatpush1.msra.mxu0 0.0
        %359 = vmatprep.subr.mxu0 0.0
        %360 = vmatpush1.msra.mxu0 0.0
        %361 = vmatprep.subr.mxu0 0.0
        %362 = vmatpush1.msra.mxu0 0.0
        %363 = vmatprep.subr.mxu0 0.0
        %364 = vmatpush1.msra.mxu0 0.0
        %365 = vmatprep.subr.mxu0 0.0
        %366 = vmatpush1.msra.mxu0 0.0
        %367 = vmatprep.subr.mxu0 0.0
        %368 = vmatpush1.msra.mxu0 0.0
        %369 = vmatprep.subr.mxu0 0.0
        %370 = vmatpush1.msra.mxu0 0.0
        %371 = vmatprep.subr.mxu0 0.0
        %372 = vmatpush1.msra.mxu0 0.0
        %373 = vmatprep.subr.mxu0 0.0
        %374 = vmatpush1.msra.mxu0 0.0
        %375 = vmatprep.subr.mxu0 0.0
        %376 = vmatpush1.msra.mxu0 0.0
        %377 = vmatprep.subr.mxu0 0.0
        %378 = vmatpush1.msra.mxu0 0.0
        %379 = vmatprep.subr.mxu0 0.0
        %380 = vmatpush1.msra.mxu0 0.0
        %381 = vmatprep.mubr.f32.mxu0 0.0
        %382 = vmatmul.mubr.f32.gmra.mrb[0].mxu0 %v315
        %v383 = vpop.f32.mrb[0].mxu0
        %v384 = vadd.f32 %v311, %v383
        %v385 = vpop.f32.mrb[0].mxu0
        %386 = vdwg.mxu0
        %387 = vst [vmem:[#allocation4] sm:$0xff] %v384
        %v388 = vld [vmem:[#allocation10] sm:$0xff]
        %v389 = vld [vmem:[#allocation10 + $0x8] sm:$0xff]
        %v390 = vld [vmem:[#allocation10 + $0x10] sm:$0xff]
        %v391 = vld [vmem:[#allocation10 + $0x18] sm:$0xff]
        %v392 = vld [vmem:[%s4] sm:$0x1]
        %v393 = vld [vmem:[%s5] sm:$0x1]
        %v394 = vld [vmem:[#allocation2] sm:$0x3]
        %v395 = vld [vmem:[#allocation3] sm:$0x3]
        %v396 = vld [vmem:[#allocation4] sm:$0x3]
        %vm397 = vcmask 261120
        %v399 = vsel %vm397, %v394, 0
        %401 = vmatprep.subr.mxu0 0.0
        %402 = vmatpush1.msra.mxu0 %v388
        %403 = vmatprep.subr.mxu0 0.0
        %404 = vmatpush1.msra.mxu0 %v389
        %405 = vmatprep.subr.mxu0 0.0
        %406 = vmatpush1.msra.mxu0 %v390
        %407 = vmatprep.subr.mxu0 0.0
        %408 = vmatpush1.msra.mxu0 %v391
        %409 = vmatprep.subr.mxu0 0.0
        %410 = vmatpush1.msra.mxu0 0.0
        %411 = vmatprep.subr.mxu0 0.0
        %412 = vmatpush1.msra.mxu0 0.0
        %413 = vmatprep.subr.mxu0 0.0
        %414 = vmatpush1.msra.mxu0 0.0
        %415 = vmatprep.subr.mxu0 0.0
        %416 = vmatpush1.msra.mxu0 0.0
        %417 = vmatprep.subr.mxu0 0.0
        %418 = vmatpush1.msra.mxu0 0.0
        %419 = vmatprep.subr.mxu0 0.0
        %420 = vmatpush1.msra.mxu0 0.0
        %421 = vmatprep.subr.mxu0 0.0
        %422 = vmatpush1.msra.mxu0 0.0
        %423 = vmatprep.subr.mxu0 0.0
        %424 = vmatpush1.msra.mxu0 0.0
        %425 = vmatprep.subr.mxu0 0.0
        %426 = vmatpush1.msra.mxu0 0.0
        %427 = vmatprep.subr.mxu0 0.0
        %428 = vmatpush1.msra.mxu0 0.0
        %429 = vmatprep.subr.mxu0 0.0
        %430 = vmatpush1.msra.mxu0 0.0
        %431 = vmatprep.subr.mxu0 0.0
        %432 = vmatpush1.msra.mxu0 0.0
        %433 = vmatprep.subr.mxu0 0.0
        %434 = vmatpush1.msra.mxu0 0.0
        %435 = vmatprep.subr.mxu0 0.0
        %436 = vmatpush1.msra.mxu0 0.0
        %437 = vmatprep.subr.mxu0 0.0
        %438 = vmatpush1.msra.mxu0 0.0
        %439 = vmatprep.subr.mxu0 0.0
        %440 = vmatpush1.msra.mxu0 0.0
        %441 = vmatprep.subr.mxu0 0.0
        %442 = vmatpush1.msra.mxu0 0.0
        %443 = vmatprep.subr.mxu0 0.0
        %444 = vmatpush1.msra.mxu0 0.0
        %445 = vmatprep.subr.mxu0 0.0
        %446 = vmatpush1.msra.mxu0 0.0
        %447 = vmatprep.subr.mxu0 0.0
        %448 = vmatpush1.msra.mxu0 0.0
        %449 = vmatprep.subr.mxu0 0.0
        %450 = vmatpush1.msra.mxu0 0.0
        %451 = vmatprep.subr.mxu0 0.0
        %452 = vmatpush1.msra.mxu0 0.0
        %453 = vmatprep.subr.mxu0 0.0
        %454 = vmatpush1.msra.mxu0 0.0
        %455 = vmatprep.subr.mxu0 0.0
        %456 = vmatpush1.msra.mxu0 0.0
        %457 = vmatprep.subr.mxu0 0.0
        %458 = vmatpush1.msra.mxu0 0.0
        %459 = vmatprep.subr.mxu0 0.0
        %460 = vmatpush1.msra.mxu0 0.0
        %461 = vmatprep.subr.mxu0 0.0
        %462 = vmatpush1.msra.mxu0 0.0
        %463 = vmatprep.subr.mxu0 0.0
        %464 = vmatpush1.msra.mxu0 0.0
        %465 = vmatprep.mubr.f32.mxu0 0.0
        %466 = vmatmul.mubr.f32.gmra.mrb[0].mxu0 %v399
        %v467 = vpop.f32.mrb[0].mxu0
        %v468 = vadd.f32 0.0, %v467
        %v469 = vpop.f32.mrb[0].mxu0
        %470 = vdwg.mxu0
        %v471 = vadd.f32 %v396, %v468
        %v472 = vmul.f32 %v471, 0.5
        %v473 = vtanh.pop %v472
        %v474 = vadd.f32 %v473, 1.0
        %v475 = vmul.f32 %v474, 0.5
        %v476 = vtanh.pop %v471
        %478 = vrot.lane.b32.xlu0 %v395, 32
        %v479 = vpop.permute.xlu0 %478
        %v481 = vmul.f32 %v475, %v479
        %483 = vrot.lane.b32.xlu0 %v476, 64
        %v484 = vpop.permute.xlu0 %483
        %v486 = vmul.f32 %v475, %v484
        %488 = vrot.lane.b32.xlu0 %v486, 32
        %v489 = vpop.permute.xlu0 %488
        %v491 = vadd.f32 %v481, %v489
        %v492 = vtanh.pop %v491
        %494 = vrot.lane.b32.xlu0 %v492, 64
        %v495 = vpop.permute.xlu0 %494
        %v497 = vmul.f32 %v475, %v495
        %499 = vrot.lane.b32.xlu0 %v497, 32
        %v500 = vpop.permute.xlu0 %499
        %vm502 = vcmask 254976
        %v503 = vsel %vm502, %v500, 0.0
        %504 = vadd.xlane.f32.xlu0 %v503
        %v505 = vpop.xlane.xlu0 %504
        %v506 = vrcp.pop 32.0
        %v507 = vmul.f32 %v505, %v506
        %v508 = vsub.f32 %v497, %v507
        %v509 = vmul.f32 %v508, %v508
        %511 = vrot.lane.b32.xlu0 %v509, 32
        %v512 = vpop.permute.xlu0 %511
        %v514 = vsel %vm502, %v512, 0.0
        %515 = vadd.xlane.f32.xlu0 %v514
        %v516 = vpop.xlane.xlu0 %515
        %v517 = vmul.f32 %v516, %v506
        %v518 = vadd.f32 %v517, 1e-05
        %v519 = vrsqrt.pop %v518
        %v520 = vmul.f32 %v508, %v519
        %v522 = vlaneseq
        %v523 = vshrl.u32 %v522, 7
        %v524 = vsub.s32 0, %v523
        %v525 = vrot.slane %v392, %v524
        %526 = vrot.lane.b32.xlu0 %v525, 96
        %v527 = vpop.permute.xlu0 %526
        %v529 = vmul.f32 %v520, %v527
        %v531 = vlaneseq
        %v532 = vshrl.u32 %v531, 7
        %v533 = vsub.s32 0, %v532
        %v534 = vrot.slane %v393, %v533
        %535 = vrot.lane.b32.xlu0 %v534, 96
        %v536 = vpop.permute.xlu0 %535
        %v538 = vadd.f32 %v529, %v536
        %540 = vrot.lane.b32.xlu0 %v538, 32
        %v541 = vpop.permute.xlu0 %540
        %543 = vst.msk [vmem:[%s295] sm:$0x3] %vm502, %v541
        %v544 = vld [vmem:[#allocation4 + $0x2] sm:$0x3]
        %v545 = vsel %vm397, %v500, 0
        %547 = vmatprep.subr.mxu0 0.0
        %548 = vmatpush1.msra.mxu0 %v388
        %549 = vmatprep.subr.mxu0 0.0
        %550 = vmatpush1.msra.mxu0 %v389
        %551 = vmatprep.subr.mxu0 0.0
        %552 = vmatpush1.msra.mxu0 %v390
        %553 = vmatprep.subr.mxu0 0.0
        %554 = vmatpush1.msra.mxu0 %v391
        %555 = vmatprep.subr.mxu0 0.0
        %556 = vmatpush1.msra.mxu0 0.0
        %557 = vmatprep.subr.mxu0 0.0
        %558 = vmatpush1.msra.mxu0 0.0
        %559 = vmatprep.subr.mxu0 0.0
        %560 = vmatpush1.msra.mxu0 0.0
        %561 = vmatprep.subr.mxu0 0.0
        %562 = vmatpush1.msra.mxu0 0.0
        %563 = vmatprep.subr.mxu0 0.0
        %564 = vmatpush1.msra.mxu0 0.0
        %565 = vmatprep.subr.mxu0 0.0
        %566 = vmatpush1.msra.mxu0 0.0
        %567 = vmatprep.subr.mxu0 0.0
        %568 = vmatpush1.msra.mxu0 0.0
        %569 = vmatprep.subr.mxu0 0.0
        %570 = vmatpush1.msra.mxu0 0.0
        %571 = vmatprep.subr.mxu0 0.0
        %572 = vmatpush1.msra.mxu0 0.0
        %573 = vmatprep.subr.mxu0 0.0
        %574 = vmatpush1.msra.mxu0 0.0
        %575 = vmatprep.subr.mxu0 0.0
        %576 = vmatpush1.msra.mxu0 0.0
        %577 = vmatprep.subr.mxu0 0.0
        %578 = vmatpush1.msra.mxu0 0.0
        %579 = vmatprep.subr.mxu0 0.0
        %580 = vmatpush1.msra.mxu0 0.0
        %581 = vmatprep.subr.mxu0 0.0
        %582 = vmatpush1.msra.mxu0 0.0
        %583 = vmatprep.subr.mxu0 0.0
        %584 = vmatpush1.msra.mxu0 0.0
        %585 = vmatprep.subr.mxu0 0.0
        %586 = vmatpush1.msra.mxu0 0.0
        %587 = vmatprep.subr.mxu0 0.0
        %588 = vmatpush1.msra.mxu0 0.0
        %589 = vmatprep.subr.mxu0 0.0
        %590 = vmatpush1.msra.mxu0 0.0
        %591 = vmatprep.subr.mxu0 0.0
        %592 = vmatpush1.msra.mxu0 0.0
        %593 = vmatprep.subr.mxu0 0.0
        %594 = vmatpush1.msra.mxu0 0.0
        %595 = vmatprep.subr.mxu0 0.0
        %596 = vmatpush1.msra.mxu0 0.0
        %597 = vmatprep.subr.mxu0 0.0
        %598 = vmatpush1.msra.mxu0 0.0
        %599 = vmatprep.subr.mxu0 0.0
        %600 = vmatpush1.msra.mxu0 0.0
        %601 = vmatprep.subr.mxu0 0.0
        %602 = vmatpush1.msra.mxu0 0.0
        %603 = vmatprep.subr.mxu0 0.0
        %604 = vmatpush1.msra.mxu0 0.0
        %605 = vmatprep.subr.mxu0 0.0
        %606 = vmatpush1.msra.mxu0 0.0
        %607 = vmatprep.subr.mxu0 0.0
        %608 = vmatpush1.msra.mxu0 0.0
        %609 = vmatprep.subr.mxu0 0.0
        %610 = vmatpush1.msra.mxu0 0.0
        %611 = vmatprep.mubr.f32.mxu0 0.0
        %612 = vmatmul.mubr.f32.gmra.mrb[0].mxu0 %v545
        %v613 = vpop.f32.mrb[0].mxu0
        %v614 = vadd.f32 0.0, %v613
        %v615 = vpop.f32.mrb[0].mxu0
        %616 = vdwg.mxu0
        %v617 = vadd.f32 %v544, %v614
        %v618 = vmul.f32 %v617, 0.5
        %v619 = vtanh.pop %v618
        %v620 = vadd.f32 %v619, 1.0
        %v621 = vmul.f32 %v620, 0.5
        %v622 = vtanh.pop %v617
        %v623 = vmul.f32 %v621, %v491
        %625 = vrot.lane.b32.xlu0 %v622, 64
        %v626 = vpop.permute.xlu0 %625
        %v628 = vmul.f32 %v621, %v626
        %630 = vrot.lane.b32.xlu0 %v628, 32
        %v631 = vpop.permute.xlu0 %630
        %v633 = vadd.f32 %v623, %v631
        %v634 = vtanh.pop %v633
        %636 = vrot.lane.b32.xlu0 %v634, 64
        %v637 = vpop.permute.xlu0 %636
        %v639 = vmul.f32 %v621, %v637
        %641 = vrot.lane.b32.xlu0 %v639, 32
        %v642 = vpop.permute.xlu0 %641
        %v644 = vsel %vm502, %v642, 0.0
        %645 = vadd.xlane.f32.xlu0 %v644
        %v646 = vpop.xlane.xlu0 %645
        %v647 = vmul.f32 %v646, %v506
        %v648 = vsub.f32 %v639, %v647
        %v649 = vmul.f32 %v648, %v648
        %651 = vrot.lane.b32.xlu0 %v649, 32
        %v652 = vpop.permute.xlu0 %651
        %v654 = vsel %vm502, %v652, 0.0
        %655 = vadd.xlane.f32.xlu0 %v654
        %v656 = vpop.xlane.xlu0 %655
        %v657 = vmul.f32 %v656, %v506
        %v658 = vadd.f32 %v657, 1e-05
        %v659 = vrsqrt.pop %v658
        %v660 = vmul.f32 %v648, %v659
        %v661 = vmul.f32 %v660, %v527
        %v662 = vadd.f32 %v661, %v536
        %664 = vrot.lane.b32.xlu0 %v662, 32
        %v665 = vpop.permute.xlu0 %664
        %667 = vst.msk [vmem:[%s295 + $0x2] sm:$0x3] %vm502, %v665
        %v668 = vld [vmem:[#allocation4 + $0x4] sm:$0x3]
        %v669 = vsel %vm397, %v642, 0
        %671 = vmatprep.subr.mxu0 0.0
        %672 = vmatpush1.msra.mxu0 %v388
        %673 = vmatprep.subr.mxu0 0.0
        %674 = vmatpush1.msra.mxu0 %v389
        %675 = vmatprep.subr.mxu0 0.0
        %676 = vmatpush1.msra.mxu0 %v390
        %677 = vmatprep.subr.mxu0 0.0
        %678 = vmatpush1.msra.mxu0 %v391
        %679 = vmatprep.subr.mxu0 0.0
        %680 = vmatpush1.msra.mxu0 0.0
        %681 = vmatprep.subr.mxu0 0.0
        %682 = vmatpush1.msra.mxu0 0.0
        %683 = vmatprep.subr.mxu0 0.0
        %684 = vmatpush1.msra.mxu0 0.0
        %685 = vmatprep.subr.mxu0 0.0
        %686 = vmatpush1.msra.mxu0 0.0
        %687 = vmatprep.subr.mxu0 0.0
        %688 = vmatpush1.msra.mxu0 0.0
        %689 = vmatprep.subr.mxu0 0.0
        %690 = vmatpush1.msra.mxu0 0.0
        %691 = vmatprep.subr.mxu0 0.0
        %692 = vmatpush1.msra.mxu0 0.0
        %693 = vmatprep.subr.mxu0 0.0
        %694 = vmatpush1.msra.mxu0 0.0
        %695 = vmatprep.subr.mxu0 0.0
        %696 = vmatpush1.msra.mxu0 0.0
        %697 = vmatprep.subr.mxu0 0.0
        %698 = vmatpush1.msra.mxu0 0.0
        %699 = vmatprep.subr.mxu0 0.0
        %700 = vmatpush1.msra.mxu0 0.0
        %701 = vmatprep.subr.mxu0 0.0
        %702 = vmatpush1.msra.mxu0 0.0
        %703 = vmatprep.subr.mxu0 0.0
        %704 = vmatpush1.msra.mxu0 0.0
        %705 = vmatprep.subr.mxu0 0.0
        %706 = vmatpush1.msra.mxu0 0.0
        %707 = vmatprep.subr.mxu0 0.0
        %708 = vmatpush1.msra.mxu0 0.0
        %709 = vmatprep.subr.mxu0 0.0
        %710 = vmatpush1.msra.mxu0 0.0
        %711 = vmatprep.subr.mxu0 0.0
        %712 = vmatpush1.msra.mxu0 0.0
        %713 = vmatprep.subr.mxu0 0.0
        %714 = vmatpush1.msra.mxu0 0.0
        %715 = vmatprep.subr.mxu0 0.0
        %716 = vmatpush1.msra.mxu0 0.0
        %717 = vmatprep.subr.mxu0 0.0
        %718 = vmatpush1.msra.mxu0 0.0
        %719 = vmatprep.subr.mxu0 0.0
        %720 = vmatpush1.msra.mxu0 0.0
        %721 = vmatprep.subr.mxu0 0.0
        %722 = vmatpush1.msra.mxu0 0.0
        %723 = vmatprep.subr.mxu0 0.0
        %724 = vmatpush1.msra.mxu0 0.0
        %725 = vmatprep.subr.mxu0 0.0
        %726 = vmatpush1.msra.mxu0 0.0
        %727 = vmatprep.subr.mxu0 0.0
        %728 = vmatpush1.msra.mxu0 0.0
        %729 = vmatprep.subr.mxu0 0.0
        %730 = vmatpush1.msra.mxu0 0.0
        %731 = vmatprep.subr.mxu0 0.0
        %732 = vmatpush1.msra.mxu0 0.0
        %733 = vmatprep.subr.mxu0 0.0
        %734 = vmatpush1.msra.mxu0 0.0
        %735 = vmatprep.mubr.f32.mxu0 0.0
        %736 = vmatmul.mubr.f32.gmra.mrb[0].mxu0 %v669
        %v737 = vpop.f32.mrb[0].mxu0
        %v738 = vadd.f32 0.0, %v737
        %v739 = vpop.f32.mrb[0].mxu0
        %740 = vdwg.mxu0
        %v741 = vadd.f32 %v668, %v738
        %v742 = vmul.f32 %v741, 0.5
        %v743 = vtanh.pop %v742
        %v744 = vadd.f32 %v743, 1.0
        %v745 = vmul.f32 %v744, 0.5
        %v746 = vtanh.pop %v741
        %v747 = vmul.f32 %v745, %v633
        %749 = vrot.lane.b32.xlu0 %v746, 64
        %v750 = vpop.permute.xlu0 %749
        %v752 = vmul.f32 %v745, %v750
        %754 = vrot.lane.b32.xlu0 %v752, 32
        %v755 = vpop.permute.xlu0 %754
        %v757 = vadd.f32 %v747, %v755
        %v758 = vtanh.pop %v757
        %760 = vrot.lane.b32.xlu0 %v758, 64
        %v761 = vpop.permute.xlu0 %760
        %v763 = vmul.f32 %v745, %v761
        %765 = vrot.lane.b32.xlu0 %v763, 32
        %v766 = vpop.permute.xlu0 %765
        %v768 = vsel %vm502, %v766, 0.0
        %769 = vadd.xlane.f32.xlu0 %v768
        %v770 = vpop.xlane.xlu0 %769
        %v771 = vmul.f32 %v770, %v506
        %v772 = vsub.f32 %v763, %v771
        %v773 = vmul.f32 %v772, %v772
        %775 = vrot.lane.b32.xlu0 %v773, 32
        %v776 = vpop.permute.xlu0 %775
        %v778 = vsel %vm502, %v776, 0.0
        %779 = vadd.xlane.f32.xlu0 %v778
        %v780 = vpop.xlane.xlu0 %779
        %v781 = vmul.f32 %v780, %v506
        %v782 = vadd.f32 %v781, 1e-05
        %v783 = vrsqrt.pop %v782
        %v784 = vmul.f32 %v772, %v783
        %v785 = vmul.f32 %v784, %v527
        %v786 = vadd.f32 %v785, %v536
        %788 = vrot.lane.b32.xlu0 %v786, 32
        %v789 = vpop.permute.xlu0 %788
        %791 = vst.msk [vmem:[%s295 + $0x4] sm:$0x3] %vm502, %v789
        %v792 = vld [vmem:[#allocation4 + $0x6] sm:$0x3]
        %v793 = vsel %vm397, %v766, 0
        %795 = vmatprep.subr.mxu0 0.0
        %796 = vmatpush1.msra.mxu0 %v388
        %797 = vmatprep.subr.mxu0 0.0
        %798 = vmatpush1.msra.mxu0 %v389
        %799 = vmatprep.subr.mxu0 0.0
        %800 = vmatpush1.msra.mxu0 %v390
        %801 = vmatprep.subr.mxu0 0.0
        %802 = vmatpush1.msra.mxu0 %v391
        %803 = vmatprep.subr.mxu0 0.0
        %804 = vmatpush1.msra.mxu0 0.0
        %805 = vmatprep.subr.mxu0 0.0
        %806 = vmatpush1.msra.mxu0 0.0
        %807 = vmatprep.subr.mxu0 0.0
        %808 = vmatpush1.msra.mxu0 0.0
        %809 = vmatprep.subr.mxu0 0.0
        %810 = vmatpush1.msra.mxu0 0.0
        %811 = vmatprep.subr.mxu0 0.0
        %812 = vmatpush1.msra.mxu0 0.0
        %813 = vmatprep.subr.mxu0 0.0
        %814 = vmatpush1.msra.mxu0 0.0
        %815 = vmatprep.subr.mxu0 0.0
        %816 = vmatpush1.msra.mxu0 0.0
        %817 = vmatprep.subr.mxu0 0.0
        %818 = vmatpush1.msra.mxu0 0.0
        %819 = vmatprep.subr.mxu0 0.0
        %820 = vmatpush1.msra.mxu0 0.0
        %821 = vmatprep.subr.mxu0 0.0
        %822 = vmatpush1.msra.mxu0 0.0
        %823 = vmatprep.subr.mxu0 0.0
        %824 = vmatpush1.msra.mxu0 0.0
        %825 = vmatprep.subr.mxu0 0.0
        %826 = vmatpush1.msra.mxu0 0.0
        %827 = vmatprep.subr.mxu0 0.0
        %828 = vmatpush1.msra.mxu0 0.0
        %829 = vmatprep.subr.mxu0 0.0
        %830 = vmatpush1.msra.mxu0 0.0
        %831 = vmatprep.subr.mxu0 0.0
        %832 = vmatpush1.msra.mxu0 0.0
        %833 = vmatprep.subr.mxu0 0.0
        %834 = vmatpush1.msra.mxu0 0.0
        %835 = vmatprep.subr.mxu0 0.0
        %836 = vmatpush1.msra.mxu0 0.0
        %837 = vmatprep.subr.mxu0 0.0
        %838 = vmatpush1.msra.mxu0 0.0
        %839 = vmatprep.subr.mxu0 0.0
        %840 = vmatpush1.msra.mxu0 0.0
        %841 = vmatprep.subr.mxu0 0.0
        %842 = vmatpush1.msra.mxu0 0.0
        %843 = vmatprep.subr.mxu0 0.0
        %844 = vmatpush1.msra.mxu0 0.0
        %845 = vmatprep.subr.mxu0 0.0
        %846 = vmatpush1.msra.mxu0 0.0
        %847 = vmatprep.subr.mxu0 0.0
        %848 = vmatpush1.msra.mxu0 0.0
        %849 = vmatprep.subr.mxu0 0.0
        %850 = vmatpush1.msra.mxu0 0.0
        %851 = vmatprep.subr.mxu0 0.0
        %852 = vmatpush1.msra.mxu0 0.0
        %853 = vmatprep.subr.mxu0 0.0
        %854 = vmatpush1.msra.mxu0 0.0
        %855 = vmatprep.subr.mxu0 0.0
        %856 = vmatpush1.msra.mxu0 0.0
        %857 = vmatprep.subr.mxu0 0.0
        %858 = vmatpush1.msra.mxu0 0.0
        %859 = vmatprep.mubr.f32.mxu0 0.0
        %860 = vmatmul.mubr.f32.gmra.mrb[0].mxu0 %v793
        %v861 = vpop.f32.mrb[0].mxu0
        %v862 = vadd.f32 0.0, %v861
        %v863 = vpop.f32.mrb[0].mxu0
        %864 = vdwg.mxu0
        %v865 = vadd.f32 %v792, %v862
        %v866 = vmul.f32 %v865, 0.5
        %v867 = vtanh.pop %v866
        %v868 = vadd.f32 %v867, 1.0
        %v869 = vmul.f32 %v868, 0.5
        %v870 = vtanh.pop %v865
        %v871 = vmul.f32 %v869, %v757
        %873 = vrot.lane.b32.xlu0 %v870, 64
        %v874 = vpop.permute.xlu0 %873
        %v876 = vmul.f32 %v869, %v874
        %878 = vrot.lane.b32.xlu0 %v876, 32
        %v879 = vpop.permute.xlu0 %878
        %v881 = vadd.f32 %v871, %v879
        %v882 = vtanh.pop %v881
        %884 = vrot.lane.b32.xlu0 %v882, 64
        %v885 = vpop.permute.xlu0 %884
        %v887 = vmul.f32 %v869, %v885
        %889 = vrot.lane.b32.xlu0 %v887, 32
        %v890 = vpop.permute.xlu0 %889
        %v892 = vsel %vm502, %v890, 0.0
        %893 = vadd.xlane.f32.xlu0 %v892
        %v894 = vpop.xlane.xlu0 %893
        %v895 = vmul.f32 %v894, %v506
        %v896 = vsub.f32 %v887, %v895
        %v897 = vmul.f32 %v896, %v896
        %899 = vrot.lane.b32.xlu0 %v897, 32
        %v900 = vpop.permute.xlu0 %899
        %v902 = vsel %vm502, %v900, 0.0
        %903 = vadd.xlane.f32.xlu0 %v902
        %v904 = vpop.xlane.xlu0 %903
        %v905 = vmul.f32 %v904, %v506
        %v906 = vadd.f32 %v905, 1e-05
        %v907 = vrsqrt.pop %v906
        %v908 = vmul.f32 %v896, %v907
        %v909 = vmul.f32 %v908, %v527
        %v910 = vadd.f32 %v909, %v536
        %912 = vrot.lane.b32.xlu0 %v910, 32
        %v913 = vpop.permute.xlu0 %912
        %915 = vst.msk [vmem:[%s295 + $0x6] sm:$0x3] %vm502, %v913
        %916 = vst.msk [vmem:[#allocation2] sm:$0x3] %vm502, %v890
        %918 = vrot.lane.b32.xlu0 %v881, 96
        %v919 = vpop.permute.xlu0 %918
        %921 = vst.msk [vmem:[#allocation3] sm:$0x3] %vm502, %v919
        %s922 = sand.u32 %s163, 1
        %s923 = scalar_lea.sflag [#allocation7], %s922
        %s924 = sand.u32 %s163, 1
        %s925 = smul.addr %s924, 8
        %s926 = scalar_lea.vmem [#allocation11], %s925
        // Predicated region
        $region61: #{tpu_custom_call.1} parent=43 // pred_check
          %p927 = pneg %p173
        $region62: #{tpu_custom_call.1} parent=43 // pred_check_branch
          %929 = sbr.rel (%p927) target = $region64
        $region63: #{tpu_custom_call.1} parent=43 // pred_region
          %s931 = ssub.s32 128, 128
          %932 = vsyncadd %s923, %s931
          %s933 = smul.addr %s24, 128
          %s934 = scalar_lea.hbm %s6, %s933
          %s936 = sshll.u32 %s926, 4
          %s937 = int_to_ptr.vmem [resolvable:$true] %s936
          %939 = dma.vmem_to_hbm [thread:$0]  %s937, 128, %s934, %s923
        $region64: #{tpu_custom_call.1} parent=43 // pred_fallthru
          _
      $region44: #{tpu_custom_call.1} parent=5 // pred_fallthru
        _
      %p940 = scmp.le.s32.totalorder 2, %s19
      // Predicated region
      $region65: #{tpu_custom_call.1} parent=5 // pred_check
        %p941 = pneg %p940
      $region66: #{tpu_custom_call.1} parent=5 // pred_check_branch
        %943 = sbr.rel (%p941) target = $region68
      $region67: #{tpu_custom_call.1} parent=5 // pred_region
        %s944 = ssub.s32 %s19, 2
        // Predicated region
        $region69: #{tpu_custom_call.1} parent=67 // pred_check
          %p945 = pneg %p179
        $region70: #{tpu_custom_call.1} parent=67 // pred_check_branch
          %947 = sbr.rel (%p945) target = $region72
        $region71: #{tpu_custom_call.1} parent=67 // pred_region
          %s948 = sand.u32 %s164, 1
          %s949 = scalar_lea.sflag [#allocation7], %s948
          %s950 = sand.u32 %s164, 1
          %s951 = smul.addr %s950, 8
          %s952 = scalar_lea.vmem [#allocation11], %s951
          %953 = dma.done %s949, 128
        $region72: #{tpu_custom_call.1} parent=67 // pred_fallthru
          _
      $region68: #{tpu_custom_call.1} parent=5 // pred_fallthru
        _
    $region6: #{tpu_custom_call.1} parent=1 // loop_footer
      %s23 = sadd.s32 1, %s19
    $region7: #{tpu_custom_call.1} parent=1 // loop_footer_branch
      %18 = sbr.rel target = $region3
    $region8: #{tpu_custom_call.1} parent=1 // loop_exit
      _
    %954 = vsyncpa [#allocation6], 1
    %s955 = scalar_lea.sflag [#allocation6], 1
    %956 = vsyncpa %s955, 1
    %957 = vsyncpa [#allocation9], 1
    %958 = vsyncpa [#allocation7], 1
    %s959 = scalar_lea.sflag [#allocation7], 1
    %960 = vsyncpa %s959, 1

</llo_original>
